<compile_context>
chip_gen: v7x
topology: tpu7x:2x2x1
jax: 0.10.0
libtpu: 0.0.40
codegen_flags: <defaults>
</compile_context>

<pallas_src>
import jax
import jax.numpy as jnp
from jax import lax
from jax.experimental import pallas as pl
from jax.experimental.pallas import tpu as pltpu


def lstm_seq_kernel(pre_ref, w_hh_ref, out_ref, hfin_ref, cfin_ref):
    """Whole-sequence LSTM recurrence in one kernel invocation (no time grid).

    pre_ref:  (T*Bp, 4H) f32  hoisted input projection + bias, gate order (i,f,o,g)
    w_hh_ref: (H, 4H)    bf16 pre-transposed recurrent weights, gate order (i,f,o,g)
    out_ref:  (T*Bp, H)  f32  hidden state for every time step
    hfin_ref: (Bp, H)    f32  final hidden state
    cfin_ref: (Bp, H)    f32  final cell state
    """
    Bp, H = hfin_ref.shape
    T = pre_ref.shape[0] // Bp

    def step(t, carry):
        h, c = carry
        row = pl.multiple_of(t * Bp, 8)
        # Only the recurrent matmul is on the serial chain: bf16 x bf16 -> f32.
        gates = pre_ref[pl.ds(row, Bp), :] + jnp.dot(
            h.astype(jnp.bfloat16), w_hh_ref[...],
            preferred_element_type=jnp.float32)               # (Bp, 4H) f32
        # Gate order (i, f, o | g): one contiguous sigmoid slab + one tanh.
        sig = jax.nn.sigmoid(gates[:, 0:3 * H])               # (Bp, 3H)
        i_g = sig[:, 0:H]
        f_g = sig[:, H:2 * H]
        o_g = sig[:, 2 * H:3 * H]
        g_g = jnp.tanh(gates[:, 3 * H:4 * H])                 # (Bp, H)
        c_new = f_g * c + i_g * g_g
        h_new = o_g * jnp.tanh(c_new)
        out_ref[pl.ds(row, Bp), :] = h_new.astype(out_ref.dtype)
        return h_new, c_new

    h0 = jnp.zeros((Bp, H), jnp.float32)
    c0 = jnp.zeros((Bp, H), jnp.float32)
    # Unroll small sequences fully for LLO scheduling visibility.
    unroll = True if T <= 32 else 4
    h_fin, c_fin = lax.fori_loop(0, T, step, (h0, c0), unroll=unroll)

    hfin_ref[...] = h_fin.astype(hfin_ref.dtype)
    cfin_ref[...] = c_fin.astype(cfin_ref.dtype)


def init_params(key, feat_dim, hidden_size):
    """Deterministic uniform(-0.1, 0.1) init, like the PyTorch LSTM() helper."""
    H, F = hidden_size, feat_dim
    k1, k2, k3, k4 = jax.random.split(key, 4)
    u = lambda k, shape: jax.random.uniform(k, shape, jnp.float32, -0.1, 0.1)
    return {
        "w_ih": u(k1, (4 * H, F)),   # PyTorch weight_ih_l0, gate order i,f,g,o
        "w_hh": u(k2, (4 * H, H)),   # PyTorch weight_hh_l0
        "b_ih": u(k3, (4 * H,)),
        "b_hh": u(k4, (4 * H,)),
    }


def _reorder_gates_ifog(w, H):
    """Reorder stacked gate blocks from PyTorch (i,f,g,o) to kernel (i,f,o,g)."""
    i, f, g, o = w[0:H], w[H:2 * H], w[2 * H:3 * H], w[3 * H:4 * H]
    return jnp.concatenate([i, f, o, g], axis=0)


def rnn_encoder_forward(src_seq, params):
    """src_seq: (B, T, F) float32 -> (encoder_out, (final_hiddens, final_cells))."""
    B, T, F = src_seq.shape
    H = params["w_hh"].shape[1]
    Bp = ((B + 7) // 8) * 8            # pad batch (sublane) dim to multiple of 8

    x_tbf = jnp.transpose(src_seq, (1, 0, 2)).astype(jnp.float32)   # (T, B, F)
    if Bp != B:
        x_tbf = jnp.pad(x_tbf, ((0, 0), (0, Bp - B), (0, 0)))
    x_2d = x_tbf.reshape(T * Bp, F)                                 # (T*Bp, F)

    # Reorder gate blocks (i,f,g,o) -> (i,f,o,g) so the kernel applies one
    # contiguous sigmoid to 3H columns and one tanh to H columns.
    w_ih_r = _reorder_gates_ifog(params["w_ih"], H)                 # (4H, F)
    w_hh_r = _reorder_gates_ifog(params["w_hh"], H)                 # (4H, H)
    bias_r = _reorder_gates_ifog(
        (params["b_ih"] + params["b_hh"])[:, None], H)[:, 0]        # (4H,)

    # Hoisted, non-recurrent input projection (K = F = 3): done in XLA, not
    # in the kernel, so the recurrence starts immediately.
    pregates = (x_2d @ w_ih_r.T + bias_r[None, :]).astype(jnp.float32)  # (T*Bp, 4H)

    # Recurrent weights in bf16 for the native MXU datapath (f32 accumulate
    # happens in-kernel via preferred_element_type).
    w_hh_t = w_hh_r.T.astype(jnp.bfloat16)                          # (H, 4H)

    out2d, h_fin, c_fin = pl.pallas_call(
        lstm_seq_kernel,
        out_shape=(jax.ShapeDtypeStruct((T * Bp, H), jnp.float32),
                   jax.ShapeDtypeStruct((Bp, H), jnp.float32),
                   jax.ShapeDtypeStruct((Bp, H), jnp.float32)),
        in_specs=[pl.BlockSpec(memory_space=pltpu.MemorySpace.VMEM)] * 2,
        out_specs=(pl.BlockSpec(memory_space=pltpu.MemorySpace.VMEM),) * 3,
    )(pregates, w_hh_t)

    out = out2d.reshape(T, Bp, H)[:, :B, :]            # drop batch padding
    encoder_out = jnp.transpose(out, (1, 0, 2))        # (B, T, H)
    final_hiddens = h_fin[:B, None, :]                 # (B, 1, H)
    final_cells = c_fin[:B, None, :]                   # (B, 1, H)
    return encoder_out, (final_hiddens, final_cells)


def rnn_encoder_reference(src_seq, params):
    """Pure-JAX (f32) reference LSTM for correctness checking."""
    B, T, F = src_seq.shape
    H = params["w_hh"].shape[1]
    w_ih, w_hh = params["w_ih"], params["w_hh"]
    b = params["b_ih"] + params["b_hh"]
    x_tbf = jnp.transpose(src_seq, (1, 0, 2))

    def step(carry, x_t):
        h, c = carry
        gates = x_t @ w_ih.T + h @ w_hh.T + b
        i = jax.nn.sigmoid(gates[:, 0:H])
        f = jax.nn.sigmoid(gates[:, H:2 * H])
        g = jnp.tanh(gates[:, 2 * H:3 * H])
        o = jax.nn.sigmoid(gates[:, 3 * H:4 * H])
        c_new = f * c + i * g
        h_new = o * jnp.tanh(c_new)
        return (h_new, c_new), h_new

    h0 = jnp.zeros((B, H), jnp.float32)
    c0 = jnp.zeros((B, H), jnp.float32)
    (h_fin, c_fin), outs = lax.scan(step, (h0, c0), x_tbf)
    return (jnp.transpose(outs, (1, 0, 2)),
            (h_fin[:, None, :], c_fin[:, None, :]))


if __name__ == "__main__":
    B, T, FEAT, H = 2, 8, 3, 128

    key = jax.random.PRNGKey(0)
    k_param, k_data = jax.random.split(key)
    params = init_params(k_param, FEAT, H)
    src_seq = jax.random.normal(k_data, (B, T, FEAT), dtype=jnp.float32)

    enc_out, (h_n, c_n) = jax.block_until_ready(
        rnn_encoder_forward(src_seq, params))

    ref_out, (ref_h, ref_c) = rnn_encoder_reference(src_seq, params)

    assert enc_out.shape == (B, T, H)
    assert h_n.shape == (B, 1, H) and c_n.shape == (B, 1, H)
    # bf16 recurrent weights -> loosened tolerance vs. the f32 reference.
    assert jnp.allclose(enc_out, ref_out, atol=5e-3, rtol=1e-2)
    assert jnp.allclose(h_n, ref_h, atol=5e-3, rtol=1e-2)
    assert jnp.allclose(c_n, ref_c, atol=5e-3, rtol=1e-2)

    print("KERNEL_OK")
</pallas_src>

<mosaic_0001>
module attributes {stable_mosaic.version = 11 : i64} {
  func.func @lstm_seq_kernel(%arg0: memref<64x512xf32, #tpu.memory_space<vmem>>, %arg1: memref<128x512xbf16, #tpu.memory_space<vmem>>, %arg2: memref<64x128xf32, #tpu.memory_space<vmem>>, %arg3: memref<8x128xf32, #tpu.memory_space<vmem>>, %arg4: memref<8x128xf32, #tpu.memory_space<vmem>>) attributes {dimension_semantics = [], scalar_prefetch = 0 : i64, scratch_operands = 0 : i64, tpu.core_type = #tpu.core_type<tc>} {
    %cst = arith.constant 0.000000e+00 : f32
    %0 = vector.broadcast %cst : f32 to vector<8x128xf32>
    %cst_0 = arith.constant 0.000000e+00 : f32
    %1 = vector.broadcast %cst_0 : f32 to vector<8x128xf32>
    %c0_i32 = arith.constant 0 : i32
    %c8_i32 = arith.constant 8 : i32
    %2 = arith.muli %c0_i32, %c8_i32 : i32
    %3 = tpu.assume_multiple %2, 8 : i32
    %4 = arith.index_cast %3 : i32 to index
    %c0 = arith.constant 0 : index
    %5 = vector.load %arg0[%4, %c0] : memref<64x512xf32, #tpu.memory_space<vmem>>, vector<8x512xf32>
    %6 = arith.truncf %0 : vector<8x128xf32> to vector<8x128xbf16>
    %c0_1 = arith.constant 0 : index
    %c0_2 = arith.constant 0 : index
    %7 = vector.load %arg1[%c0_1, %c0_2] : memref<128x512xbf16, #tpu.memory_space<vmem>>, vector<128x512xbf16>
    %cst_3 = arith.constant dense<0.000000e+00> : vector<8x512xf32>
    %8 = tpu.matmul %6, %7, %cst_3 {dimension_numbers = #tpu.dot_dimension_numbers<[1], [0], [0], [1], [0, 0, 1, 1], [], []>} : vector<8x128xbf16>, vector<128x512xbf16>, vector<8x512xf32> -> vector<8x512xf32>
    %9 = arith.addf %5, %8 : vector<8x512xf32>
    %10 = vector.extract_strided_slice %9 {offsets = [0, 0], sizes = [8, 384], strides = [1, 1]} : vector<8x512xf32> to vector<8x384xf32>
    %11 = arith.negf %10 : vector<8x384xf32>
    %12 = math.exp %11 : vector<8x384xf32>
    %cst_4 = arith.constant 1.000000e+00 : f32
    %13 = vector.broadcast %cst_4 : f32 to vector<8x384xf32>
    %14 = arith.addf %13, %12 : vector<8x384xf32>
    %15 = arith.divf %13, %14 : vector<8x384xf32>
    %16 = vector.extract_strided_slice %15 {offsets = [0, 0], sizes = [8, 128], strides = [1, 1]} : vector<8x384xf32> to vector<8x128xf32>
    %17 = vector.extract_strided_slice %15 {offsets = [0, 128], sizes = [8, 128], strides = [1, 1]} : vector<8x384xf32> to vector<8x128xf32>
    %18 = vector.extract_strided_slice %15 {offsets = [0, 256], sizes = [8, 128], strides = [1, 1]} : vector<8x384xf32> to vector<8x128xf32>
    %19 = vector.extract_strided_slice %9 {offsets = [0, 384], sizes = [8, 128], strides = [1, 1]} : vector<8x512xf32> to vector<8x128xf32>
    %20 = math.tanh %19 : vector<8x128xf32>
    %21 = arith.mulf %17, %1 : vector<8x128xf32>
    %22 = arith.mulf %16, %20 : vector<8x128xf32>
    %23 = arith.addf %21, %22 : vector<8x128xf32>
    %24 = math.tanh %23 : vector<8x128xf32>
    %25 = arith.mulf %18, %24 : vector<8x128xf32>
    %26 = arith.index_cast %3 : i32 to index
    %c0_5 = arith.constant 0 : index
    %27 = vector.load %arg2[%26, %c0_5] : memref<64x128xf32, #tpu.memory_space<vmem>>, vector<8x128xf32>
    tpu.vector_store %arg2[%26, %c0_5], %25 {strides = array<i32>} : memref<64x128xf32, #tpu.memory_space<vmem>>, vector<8x128xf32>,
    %c1_i32 = arith.constant 1 : i32
    %c8_i32_6 = arith.constant 8 : i32
    %28 = arith.muli %c1_i32, %c8_i32_6 : i32
    %29 = tpu.assume_multiple %28, 8 : i32
    %30 = arith.index_cast %29 : i32 to index
    %c0_7 = arith.constant 0 : index
    %31 = vector.load %arg0[%30, %c0_7] : memref<64x512xf32, #tpu.memory_space<vmem>>, vector<8x512xf32>
    %32 = arith.truncf %25 : vector<8x128xf32> to vector<8x128xbf16>
    %c0_8 = arith.constant 0 : index
    %c0_9 = arith.constant 0 : index
    %33 = vector.load %arg1[%c0_8, %c0_9] : memref<128x512xbf16, #tpu.memory_space<vmem>>, vector<128x512xbf16>
    %cst_10 = arith.constant dense<0.000000e+00> : vector<8x512xf32>
    %34 = tpu.matmul %32, %33, %cst_10 {dimension_numbers = #tpu.dot_dimension_numbers<[1], [0], [0], [1], [0, 0, 1, 1], [], []>} : vector<8x128xbf16>, vector<128x512xbf16>, vector<8x512xf32> -> vector<8x512xf32>
    %35 = arith.addf %31, %34 : vector<8x512xf32>
    %36 = vector.extract_strided_slice %35 {offsets = [0, 0], sizes = [8, 384], strides = [1, 1]} : vector<8x512xf32> to vector<8x384xf32>
    %37 = arith.negf %36 : vector<8x384xf32>
    %38 = math.exp %37 : vector<8x384xf32>
    %cst_11 = arith.constant 1.000000e+00 : f32
    %39 = vector.broadcast %cst_11 : f32 to vector<8x384xf32>
    %40 = arith.addf %39, %38 : vector<8x384xf32>
    %41 = arith.divf %39, %40 : vector<8x384xf32>
    %42 = vector.extract_strided_slice %41 {offsets = [0, 0], sizes = [8, 128], strides = [1, 1]} : vector<8x384xf32> to vector<8x128xf32>
    %43 = vector.extract_strided_slice %41 {offsets = [0, 128], sizes = [8, 128], strides = [1, 1]} : vector<8x384xf32> to vector<8x128xf32>
    %44 = vector.extract_strided_slice %41 {offsets = [0, 256], sizes = [8, 128], strides = [1, 1]} : vector<8x384xf32> to vector<8x128xf32>
    %45 = vector.extract_strided_slice %35 {offsets = [0, 384], sizes = [8, 128], strides = [1, 1]} : vector<8x512xf32> to vector<8x128xf32>
    %46 = math.tanh %45 : vector<8x128xf32>
    %47 = arith.mulf %43, %23 : vector<8x128xf32>
    %48 = arith.mulf %42, %46 : vector<8x128xf32>
    %49 = arith.addf %47, %48 : vector<8x128xf32>
    %50 = math.tanh %49 : vector<8x128xf32>
    %51 = arith.mulf %44, %50 : vector<8x128xf32>
    %52 = arith.index_cast %29 : i32 to index
    %c0_12 = arith.constant 0 : index
    %53 = vector.load %arg2[%52, %c0_12] : memref<64x128xf32, #tpu.memory_space<vmem>>, vector<8x128xf32>
    tpu.vector_store %arg2[%52, %c0_12], %51 {strides = array<i32>} : memref<64x128xf32, #tpu.memory_space<vmem>>, vector<8x128xf32>,
    %c2_i32 = arith.constant 2 : i32
    %c8_i32_13 = arith.constant 8 : i32
    %54 = arith.muli %c2_i32, %c8_i32_13 : i32
    %55 = tpu.assume_multiple %54, 8 : i32
    %56 = arith.index_cast %55 : i32 to index
    %c0_14 = arith.constant 0 : index
    %57 = vector.load %arg0[%56, %c0_14] : memref<64x512xf32, #tpu.memory_space<vmem>>, vector<8x512xf32>
    %58 = arith.truncf %51 : vector<8x128xf32> to vector<8x128xbf16>
    %c0_15 = arith.constant 0 : index
    %c0_16 = arith.constant 0 : index
    %59 = vector.load %arg1[%c0_15, %c0_16] : memref<128x512xbf16, #tpu.memory_space<vmem>>, vector<128x512xbf16>
    %cst_17 = arith.constant dense<0.000000e+00> : vector<8x512xf32>
    %60 = tpu.matmul %58, %59, %cst_17 {dimension_numbers = #tpu.dot_dimension_numbers<[1], [0], [0], [1], [0, 0, 1, 1], [], []>} : vector<8x128xbf16>, vector<128x512xbf16>, vector<8x512xf32> -> vector<8x512xf32>
    %61 = arith.addf %57, %60 : vector<8x512xf32>
    %62 = vector.extract_strided_slice %61 {offsets = [0, 0], sizes = [8, 384], strides = [1, 1]} : vector<8x512xf32> to vector<8x384xf32>
    %63 = arith.negf %62 : vector<8x384xf32>
    %64 = math.exp %63 : vector<8x384xf32>
    %cst_18 = arith.constant 1.000000e+00 : f32
    %65 = vector.broadcast %cst_18 : f32 to vector<8x384xf32>
    %66 = arith.addf %65, %64 : vector<8x384xf32>
    %67 = arith.divf %65, %66 : vector<8x384xf32>
    %68 = vector.extract_strided_slice %67 {offsets = [0, 0], sizes = [8, 128], strides = [1, 1]} : vector<8x384xf32> to vector<8x128xf32>
    %69 = vector.extract_strided_slice %67 {offsets = [0, 128], sizes = [8, 128], strides = [1, 1]} : vector<8x384xf32> to vector<8x128xf32>
    %70 = vector.extract_strided_slice %67 {offsets = [0, 256], sizes = [8, 128], strides = [1, 1]} : vector<8x384xf32> to vector<8x128xf32>
    %71 = vector.extract_strided_slice %61 {offsets = [0, 384], sizes = [8, 128], strides = [1, 1]} : vector<8x512xf32> to vector<8x128xf32>
    %72 = math.tanh %71 : vector<8x128xf32>
    %73 = arith.mulf %69, %49 : vector<8x128xf32>
    %74 = arith.mulf %68, %72 : vector<8x128xf32>
    %75 = arith.addf %73, %74 : vector<8x128xf32>
    %76 = math.tanh %75 : vector<8x128xf32>
    %77 = arith.mulf %70, %76 : vector<8x128xf32>
    %78 = arith.index_cast %55 : i32 to index
    %c0_19 = arith.constant 0 : index
    %79 = vector.load %arg2[%78, %c0_19] : memref<64x128xf32, #tpu.memory_space<vmem>>, vector<8x128xf32>
    tpu.vector_store %arg2[%78, %c0_19], %77 {strides = array<i32>} : memref<64x128xf32, #tpu.memory_space<vmem>>, vector<8x128xf32>,
    %c3_i32 = arith.constant 3 : i32
    %c8_i32_20 = arith.constant 8 : i32
    %80 = arith.muli %c3_i32, %c8_i32_20 : i32
    %81 = tpu.assume_multiple %80, 8 : i32
    %82 = arith.index_cast %81 : i32 to index
    %c0_21 = arith.constant 0 : index
    %83 = vector.load %arg0[%82, %c0_21] : memref<64x512xf32, #tpu.memory_space<vmem>>, vector<8x512xf32>
    %84 = arith.truncf %77 : vector<8x128xf32> to vector<8x128xbf16>
    %c0_22 = arith.constant 0 : index
    %c0_23 = arith.constant 0 : index
    %85 = vector.load %arg1[%c0_22, %c0_23] : memref<128x512xbf16, #tpu.memory_space<vmem>>, vector<128x512xbf16>
    %cst_24 = arith.constant dense<0.000000e+00> : vector<8x512xf32>
    %86 = tpu.matmul %84, %85, %cst_24 {dimension_numbers = #tpu.dot_dimension_numbers<[1], [0], [0], [1], [0, 0, 1, 1], [], []>} : vector<8x128xbf16>, vector<128x512xbf16>, vector<8x512xf32> -> vector<8x512xf32>
    %87 = arith.addf %83, %86 : vector<8x512xf32>
    %88 = vector.extract_strided_slice %87 {offsets = [0, 0], sizes = [8, 384], strides = [1, 1]} : vector<8x512xf32> to vector<8x384xf32>
    %89 = arith.negf %88 : vector<8x384xf32>
    %90 = math.exp %89 : vector<8x384xf32>
    %cst_25 = arith.constant 1.000000e+00 : f32
    %91 = vector.broadcast %cst_25 : f32 to vector<8x384xf32>
    %92 = arith.addf %91, %90 : vector<8x384xf32>
    %93 = arith.divf %91, %92 : vector<8x384xf32>
    %94 = vector.extract_strided_slice %93 {offsets = [0, 0], sizes = [8, 128], strides = [1, 1]} : vector<8x384xf32> to vector<8x128xf32>
    %95 = vector.extract_strided_slice %93 {offsets = [0, 128], sizes = [8, 128], strides = [1, 1]} : vector<8x384xf32> to vector<8x128xf32>
    %96 = vector.extract_strided_slice %93 {offsets = [0, 256], sizes = [8, 128], strides = [1, 1]} : vector<8x384xf32> to vector<8x128xf32>
    %97 = vector.extract_strided_slice %87 {offsets = [0, 384], sizes = [8, 128], strides = [1, 1]} : vector<8x512xf32> to vector<8x128xf32>
    %98 = math.tanh %97 : vector<8x128xf32>
    %99 = arith.mulf %95, %75 : vector<8x128xf32>
    %100 = arith.mulf %94, %98 : vector<8x128xf32>
    %101 = arith.addf %99, %100 : vector<8x128xf32>
    %102 = math.tanh %101 : vector<8x128xf32>
    %103 = arith.mulf %96, %102 : vector<8x128xf32>
    %104 = arith.index_cast %81 : i32 to index
    %c0_26 = arith.constant 0 : index
    %105 = vector.load %arg2[%104, %c0_26] : memref<64x128xf32, #tpu.memory_space<vmem>>, vector<8x128xf32>
    tpu.vector_store %arg2[%104, %c0_26], %103 {strides = array<i32>} : memref<64x128xf32, #tpu.memory_space<vmem>>, vector<8x128xf32>,
    %c4_i32 = arith.constant 4 : i32
    %c8_i32_27 = arith.constant 8 : i32
    %106 = arith.muli %c4_i32, %c8_i32_27 : i32
    %107 = tpu.assume_multiple %106, 8 : i32
    %108 = arith.index_cast %107 : i32 to index
    %c0_28 = arith.constant 0 : index
    %109 = vector.load %arg0[%108, %c0_28] : memref<64x512xf32, #tpu.memory_space<vmem>>, vector<8x512xf32>
    %110 = arith.truncf %103 : vector<8x128xf32> to vector<8x128xbf16>
    %c0_29 = arith.constant 0 : index
    %c0_30 = arith.constant 0 : index
    %111 = vector.load %arg1[%c0_29, %c0_30] : memref<128x512xbf16, #tpu.memory_space<vmem>>, vector<128x512xbf16>
    %cst_31 = arith.constant dense<0.000000e+00> : vector<8x512xf32>
    %112 = tpu.matmul %110, %111, %cst_31 {dimension_numbers = #tpu.dot_dimension_numbers<[1], [0], [0], [1], [0, 0, 1, 1], [], []>} : vector<8x128xbf16>, vector<128x512xbf16>, vector<8x512xf32> -> vector<8x512xf32>
    %113 = arith.addf %109, %112 : vector<8x512xf32>
    %114 = vector.extract_strided_slice %113 {offsets = [0, 0], sizes = [8, 384], strides = [1, 1]} : vector<8x512xf32> to vector<8x384xf32>
    %115 = arith.negf %114 : vector<8x384xf32>
    %116 = math.exp %115 : vector<8x384xf32>
    %cst_32 = arith.constant 1.000000e+00 : f32
    %117 = vector.broadcast %cst_32 : f32 to vector<8x384xf32>
    %118 = arith.addf %117, %116 : vector<8x384xf32>
    %119 = arith.divf %117, %118 : vector<8x384xf32>
    %120 = vector.extract_strided_slice %119 {offsets = [0, 0], sizes = [8, 128], strides = [1, 1]} : vector<8x384xf32> to vector<8x128xf32>
    %121 = vector.extract_strided_slice %119 {offsets = [0, 128], sizes = [8, 128], strides = [1, 1]} : vector<8x384xf32> to vector<8x128xf32>
    %122 = vector.extract_strided_slice %119 {offsets = [0, 256], sizes = [8, 128], strides = [1, 1]} : vector<8x384xf32> to vector<8x128xf32>
    %123 = vector.extract_strided_slice %113 {offsets = [0, 384], sizes = [8, 128], strides = [1, 1]} : vector<8x512xf32> to vector<8x128xf32>
    %124 = math.tanh %123 : vector<8x128xf32>
    %125 = arith.mulf %121, %101 : vector<8x128xf32>
    %126 = arith.mulf %120, %124 : vector<8x128xf32>
    %127 = arith.addf %125, %126 : vector<8x128xf32>
    %128 = math.tanh %127 : vector<8x128xf32>
    %129 = arith.mulf %122, %128 : vector<8x128xf32>
    %130 = arith.index_cast %107 : i32 to index
    %c0_33 = arith.constant 0 : index
    %131 = vector.load %arg2[%130, %c0_33] : memref<64x128xf32, #tpu.memory_space<vmem>>, vector<8x128xf32>
    tpu.vector_store %arg2[%130, %c0_33], %129 {strides = array<i32>} : memref<64x128xf32, #tpu.memory_space<vmem>>, vector<8x128xf32>,
    %c5_i32 = arith.constant 5 : i32
    %c8_i32_34 = arith.constant 8 : i32
    %132 = arith.muli %c5_i32, %c8_i32_34 : i32
    %133 = tpu.assume_multiple %132, 8 : i32
    %134 = arith.index_cast %133 : i32 to index
    %c0_35 = arith.constant 0 : index
    %135 = vector.load %arg0[%134, %c0_35] : memref<64x512xf32, #tpu.memory_space<vmem>>, vector<8x512xf32>
    %136 = arith.truncf %129 : vector<8x128xf32> to vector<8x128xbf16>
    %c0_36 = arith.constant 0 : index
    %c0_37 = arith.constant 0 : index
    %137 = vector.load %arg1[%c0_36, %c0_37] : memref<128x512xbf16, #tpu.memory_space<vmem>>, vector<128x512xbf16>
    %cst_38 = arith.constant dense<0.000000e+00> : vector<8x512xf32>
    %138 = tpu.matmul %136, %137, %cst_38 {dimension_numbers = #tpu.dot_dimension_numbers<[1], [0], [0], [1], [0, 0, 1, 1], [], []>} : vector<8x128xbf16>, vector<128x512xbf16>, vector<8x512xf32> -> vector<8x512xf32>
    %139 = arith.addf %135, %138 : vector<8x512xf32>
    %140 = vector.extract_strided_slice %139 {offsets = [0, 0], sizes = [8, 384], strides = [1, 1]} : vector<8x512xf32> to vector<8x384xf32>
    %141 = arith.negf %140 : vector<8x384xf32>
    %142 = math.exp %141 : vector<8x384xf32>
    %cst_39 = arith.constant 1.000000e+00 : f32
    %143 = vector.broadcast %cst_39 : f32 to vector<8x384xf32>
    %144 = arith.addf %143, %142 : vector<8x384xf32>
    %145 = arith.divf %143, %144 : vector<8x384xf32>
    %146 = vector.extract_strided_slice %145 {offsets = [0, 0], sizes = [8, 128], strides = [1, 1]} : vector<8x384xf32> to vector<8x128xf32>
    %147 = vector.extract_strided_slice %145 {offsets = [0, 128], sizes = [8, 128], strides = [1, 1]} : vector<8x384xf32> to vector<8x128xf32>
    %148 = vector.extract_strided_slice %145 {offsets = [0, 256], sizes = [8, 128], strides = [1, 1]} : vector<8x384xf32> to vector<8x128xf32>
    %149 = vector.extract_strided_slice %139 {offsets = [0, 384], sizes = [8, 128], strides = [1, 1]} : vector<8x512xf32> to vector<8x128xf32>
    %150 = math.tanh %149 : vector<8x128xf32>
    %151 = arith.mulf %147, %127 : vector<8x128xf32>
    %152 = arith.mulf %146, %150 : vector<8x128xf32>
    %153 = arith.addf %151, %152 : vector<8x128xf32>
    %154 = math.tanh %153 : vector<8x128xf32>
    %155 = arith.mulf %148, %154 : vector<8x128xf32>
    %156 = arith.index_cast %133 : i32 to index
    %c0_40 = arith.constant 0 : index
    %157 = vector.load %arg2[%156, %c0_40] : memref<64x128xf32, #tpu.memory_space<vmem>>, vector<8x128xf32>
    tpu.vector_store %arg2[%156, %c0_40], %155 {strides = array<i32>} : memref<64x128xf32, #tpu.memory_space<vmem>>, vector<8x128xf32>,
    %c6_i32 = arith.constant 6 : i32
    %c8_i32_41 = arith.constant 8 : i32
    %158 = arith.muli %c6_i32, %c8_i32_41 : i32
    %159 = tpu.assume_multiple %158, 8 : i32
    %160 = arith.index_cast %159 : i32 to index
    %c0_42 = arith.constant 0 : index
    %161 = vector.load %arg0[%160, %c0_42] : memref<64x512xf32, #tpu.memory_space<vmem>>, vector<8x512xf32>
    %162 = arith.truncf %155 : vector<8x128xf32> to vector<8x128xbf16>
    %c0_43 = arith.constant 0 : index
    %c0_44 = arith.constant 0 : index
    %163 = vector.load %arg1[%c0_43, %c0_44] : memref<128x512xbf16, #tpu.memory_space<vmem>>, vector<128x512xbf16>
    %cst_45 = arith.constant dense<0.000000e+00> : vector<8x512xf32>
    %164 = tpu.matmul %162, %163, %cst_45 {dimension_numbers = #tpu.dot_dimension_numbers<[1], [0], [0], [1], [0, 0, 1, 1], [], []>} : vector<8x128xbf16>, vector<128x512xbf16>, vector<8x512xf32> -> vector<8x512xf32>
    %165 = arith.addf %161, %164 : vector<8x512xf32>
    %166 = vector.extract_strided_slice %165 {offsets = [0, 0], sizes = [8, 384], strides = [1, 1]} : vector<8x512xf32> to vector<8x384xf32>
    %167 = arith.negf %166 : vector<8x384xf32>
    %168 = math.exp %167 : vector<8x384xf32>
    %cst_46 = arith.constant 1.000000e+00 : f32
    %169 = vector.broadcast %cst_46 : f32 to vector<8x384xf32>
    %170 = arith.addf %169, %168 : vector<8x384xf32>
    %171 = arith.divf %169, %170 : vector<8x384xf32>
    %172 = vector.extract_strided_slice %171 {offsets = [0, 0], sizes = [8, 128], strides = [1, 1]} : vector<8x384xf32> to vector<8x128xf32>
    %173 = vector.extract_strided_slice %171 {offsets = [0, 128], sizes = [8, 128], strides = [1, 1]} : vector<8x384xf32> to vector<8x128xf32>
    %174 = vector.extract_strided_slice %171 {offsets = [0, 256], sizes = [8, 128], strides = [1, 1]} : vector<8x384xf32> to vector<8x128xf32>
    %175 = vector.extract_strided_slice %165 {offsets = [0, 384], sizes = [8, 128], strides = [1, 1]} : vector<8x512xf32> to vector<8x128xf32>
    %176 = math.tanh %175 : vector<8x128xf32>
    %177 = arith.mulf %173, %153 : vector<8x128xf32>
    %178 = arith.mulf %172, %176 : vector<8x128xf32>
    %179 = arith.addf %177, %178 : vector<8x128xf32>
    %180 = math.tanh %179 : vector<8x128xf32>
    %181 = arith.mulf %174, %180 : vector<8x128xf32>
    %182 = arith.index_cast %159 : i32 to index
    %c0_47 = arith.constant 0 : index
    %183 = vector.load %arg2[%182, %c0_47] : memref<64x128xf32, #tpu.memory_space<vmem>>, vector<8x128xf32>
    tpu.vector_store %arg2[%182, %c0_47], %181 {strides = array<i32>} : memref<64x128xf32, #tpu.memory_space<vmem>>, vector<8x128xf32>,
    %c7_i32 = arith.constant 7 : i32
    %c8_i32_48 = arith.constant 8 : i32
    %184 = arith.muli %c7_i32, %c8_i32_48 : i32
    %185 = tpu.assume_multiple %184, 8 : i32
    %186 = arith.index_cast %185 : i32 to index
    %c0_49 = arith.constant 0 : index
    %187 = vector.load %arg0[%186, %c0_49] : memref<64x512xf32, #tpu.memory_space<vmem>>, vector<8x512xf32>
    %188 = arith.truncf %181 : vector<8x128xf32> to vector<8x128xbf16>
    %c0_50 = arith.constant 0 : index
    %c0_51 = arith.constant 0 : index
    %189 = vector.load %arg1[%c0_50, %c0_51] : memref<128x512xbf16, #tpu.memory_space<vmem>>, vector<128x512xbf16>
    %cst_52 = arith.constant dense<0.000000e+00> : vector<8x512xf32>
    %190 = tpu.matmul %188, %189, %cst_52 {dimension_numbers = #tpu.dot_dimension_numbers<[1], [0], [0], [1], [0, 0, 1, 1], [], []>} : vector<8x128xbf16>, vector<128x512xbf16>, vector<8x512xf32> -> vector<8x512xf32>
    %191 = arith.addf %187, %190 : vector<8x512xf32>
    %192 = vector.extract_strided_slice %191 {offsets = [0, 0], sizes = [8, 384], strides = [1, 1]} : vector<8x512xf32> to vector<8x384xf32>
    %193 = arith.negf %192 : vector<8x384xf32>
    %194 = math.exp %193 : vector<8x384xf32>
    %cst_53 = arith.constant 1.000000e+00 : f32
    %195 = vector.broadcast %cst_53 : f32 to vector<8x384xf32>
    %196 = arith.addf %195, %194 : vector<8x384xf32>
    %197 = arith.divf %195, %196 : vector<8x384xf32>
    %198 = vector.extract_strided_slice %197 {offsets = [0, 0], sizes = [8, 128], strides = [1, 1]} : vector<8x384xf32> to vector<8x128xf32>
    %199 = vector.extract_strided_slice %197 {offsets = [0, 128], sizes = [8, 128], strides = [1, 1]} : vector<8x384xf32> to vector<8x128xf32>
    %200 = vector.extract_strided_slice %197 {offsets = [0, 256], sizes = [8, 128], strides = [1, 1]} : vector<8x384xf32> to vector<8x128xf32>
    %201 = vector.extract_strided_slice %191 {offsets = [0, 384], sizes = [8, 128], strides = [1, 1]} : vector<8x512xf32> to vector<8x128xf32>
    %202 = math.tanh %201 : vector<8x128xf32>
    %203 = arith.mulf %199, %179 : vector<8x128xf32>
    %204 = arith.mulf %198, %202 : vector<8x128xf32>
    %205 = arith.addf %203, %204 : vector<8x128xf32>
    %206 = math.tanh %205 : vector<8x128xf32>
    %207 = arith.mulf %200, %206 : vector<8x128xf32>
    %208 = arith.index_cast %185 : i32 to index
    %c0_54 = arith.constant 0 : index
    %209 = vector.load %arg2[%208, %c0_54] : memref<64x128xf32, #tpu.memory_space<vmem>>, vector<8x128xf32>
    tpu.vector_store %arg2[%208, %c0_54], %207 {strides = array<i32>} : memref<64x128xf32, #tpu.memory_space<vmem>>, vector<8x128xf32>,
    %c8_i32_55 = arith.constant 8 : i32
    %c0_56 = arith.constant 0 : index
    %c0_57 = arith.constant 0 : index
    %210 = vector.load %arg3[%c0_56, %c0_57] : memref<8x128xf32, #tpu.memory_space<vmem>>, vector<8x128xf32>
    tpu.vector_store %arg3[%c0_56, %c0_57], %207 {strides = array<i32>} : memref<8x128xf32, #tpu.memory_space<vmem>>, vector<8x128xf32>,
    %c0_58 = arith.constant 0 : index
    %c0_59 = arith.constant 0 : index
    %211 = vector.load %arg4[%c0_58, %c0_59] : memref<8x128xf32, #tpu.memory_space<vmem>>, vector<8x128xf32>
    tpu.vector_store %arg4[%c0_58, %c0_59], %205 {strides = array<i32>} : memref<8x128xf32, #tpu.memory_space<vmem>>, vector<8x128xf32>,
    return
  }
}

</mosaic_0001>

<llo_original>
// kernel: tpu_custom_call.1
$region0: #{tpu_custom_call.1}
  #allocation0 [shape = 'u32[]', space=smem, size = 0x4, offset = 0x4, fixed_abs, tag = 'smem constant byte address 0x4 - core index']
  #allocation1 [shape = 'u32[144,128]{1,0:T(1,128)}', space=vmem, size = 0x12000, scoped, tag = 'internal scratch']
  %s0 = inlined_call_operand.hbm [shape: f32[64,512], index: 0, kind: input, shape index: {}]
  %s1 = inlined_call_operand.hbm [shape: bf16[128,512], index: 1, kind: input, shape index: {}]
  %s2 = inlined_call_operand.hbm [shape: f32[64,128], index: 2, kind: output, shape index: {0}]
  %s3 = inlined_call_operand.hbm [shape: f32[8,128], index: 3, kind: output, shape index: {1}]
  %s4 = inlined_call_operand.hbm [shape: f32[8,128], index: 4, kind: output, shape index: {2}]
  %5 = xla_tuple %s2, %s3, %s4
  %s6 = sld [smem:[#allocation0]]
  $region42: #{tpu_custom_call.1} parent=0
    _
  %s8 = ssub.s32 1, %s6
  %s9 = scalar_select 0, %s8, %s6
  $region1: #{tpu_custom_call.1} parent=0
    #allocation2 [shape = 'u8[131072]{0}', space=vmem, size = 0x20000, scoped, tag = 'input window, operand 0, single buffered']
    #allocation3 [shape = 's32[1]{0}', space=sflag, size = 0x4, scoped, tag = 'scoped memory for tpu_custom_call.1']
    #allocation4 [shape = 's32[1]{0}', space=sflag, size = 0x4, scoped, tag = 'scoped memory for tpu_custom_call.1']
    #allocation5 [shape = 'u8[131072]{0}', space=vmem, size = 0x20000, scoped, tag = 'input window, operand 1, single buffered']
    #allocation6 [shape = 's32[1]{0}', space=sflag, size = 0x4, scoped, tag = 'scoped memory for tpu_custom_call.1']
    #allocation7 [shape = 'u8[32768]{0}', space=vmem, size = 0x8000, scoped, tag = 'output window, operand 0, single buffered']
    #allocation8 [shape = 'u8[4096]{0}', space=vmem, size = 0x1000, scoped, tag = 'output window, operand 1, single buffered']
    #allocation9 [shape = 's32[1]{0}', space=sflag, size = 0x4, scoped, tag = 'scoped memory for tpu_custom_call.1']
    #allocation10 [shape = 'u8[4096]{0}', space=vmem, size = 0x1000, scoped, tag = 'output window, operand 2, single buffered']
    %10 = vsyncpa [#allocation3], 0
    %11 = vsyncpa [#allocation6], 0
    %12 = vsyncpa [#allocation4], 0
    %13 = vsyncpa [#allocation9], 0
    // Predicated region
    $region2: #{tpu_custom_call.1} parent=1 // pred_check
      _
    $region3: #{tpu_custom_call.1} parent=1 // pred_check_branch
      %15 = sbr.rel (0) target = $region5
    $region4: #{tpu_custom_call.1} parent=1 // pred_region
      %s17 = ssub.s32 4096, 4096
      %18 = vsyncadd [#allocation3], %s17
      %s19 = sshll.u32 [#allocation2], 4
      %s20 = int_to_ptr.vmem [resolvable:$true] %s19
      %25 = dma.hbm_to_vmem [thread:$0]  %s0, 4096, %s20, [#allocation3], 512, 512, 32
    $region5: #{tpu_custom_call.1} parent=1 // pred_fallthru
      _
    // Predicated region
    $region6: #{tpu_custom_call.1} parent=1 // pred_check
      _
    $region7: #{tpu_custom_call.1} parent=1 // pred_check_branch
      %27 = sbr.rel (0) target = $region9
    $region8: #{tpu_custom_call.1} parent=1 // pred_region
      %s29 = ssub.s32 4096, 4096
      %30 = vsyncadd [#allocation6], %s29
      %s31 = sshll.u32 [#allocation5], 4
      %s32 = int_to_ptr.vmem [resolvable:$true] %s31
      %37 = dma.hbm_to_vmem [thread:$0]  %s1, 4096, %s32, [#allocation6], 256, 256, 16
    $region9: #{tpu_custom_call.1} parent=1 // pred_fallthru
      _
    // Predicated region
    $region10: #{tpu_custom_call.1} parent=1 // pred_check
      _
    $region11: #{tpu_custom_call.1} parent=1 // pred_check_branch
      %39 = sbr.rel (0) target = $region13
    $region12: #{tpu_custom_call.1} parent=1 // pred_region
      %40 = dma.done [#allocation3], 4096
    $region13: #{tpu_custom_call.1} parent=1 // pred_fallthru
      _
    // Predicated region
    $region14: #{tpu_custom_call.1} parent=1 // pred_check
      _
    $region15: #{tpu_custom_call.1} parent=1 // pred_check_branch
      %42 = sbr.rel (0) target = $region17
    $region16: #{tpu_custom_call.1} parent=1 // pred_region
      %43 = dma.done [#allocation6], 4096
    $region17: #{tpu_custom_call.1} parent=1 // pred_fallthru
      _
    %s45 = smul.u32 0, 4
    %s46 = smul.addr %s45, 8
    %s47 = scalar_lea.vmem [#allocation2], %s46
    %v48 = vld [vmem:[%s47] sm:$0xff]
    %v49 = vld [vmem:[%s47 + $0x8] sm:$0xff]
    %v50 = vld [vmem:[%s47 + $0x10] sm:$0xff]
    %v51 = vld [vmem:[%s47 + $0x18] sm:$0xff]
    %v52 = vld [vmem:[#allocation5] sm:$0xff]
    %v53 = vld [vmem:[#allocation5 + $0x8] sm:$0xff]
    %v54 = vld [vmem:[#allocation5 + $0x10] sm:$0xff]
    %v55 = vld [vmem:[#allocation5 + $0x18] sm:$0xff]
    %v56 = vld [vmem:[#allocation5 + $0x20] sm:$0xff]
    %v57 = vld [vmem:[#allocation5 + $0x28] sm:$0xff]
    %v58 = vld [vmem:[#allocation5 + $0x30] sm:$0xff]
    %v59 = vld [vmem:[#allocation5 + $0x38] sm:$0xff]
    %v60 = vld [vmem:[#allocation5 + $0x40] sm:$0xff]
    %v61 = vld [vmem:[#allocation5 + $0x48] sm:$0xff]
    %v62 = vld [vmem:[#allocation5 + $0x50] sm:$0xff]
    %v63 = vld [vmem:[#allocation5 + $0x58] sm:$0xff]
    %v64 = vld [vmem:[#allocation5 + $0x60] sm:$0xff]
    %v65 = vld [vmem:[#allocation5 + $0x68] sm:$0xff]
    %v66 = vld [vmem:[#allocation5 + $0x70] sm:$0xff]
    %v67 = vld [vmem:[#allocation5 + $0x78] sm:$0xff]
    %v68 = vld [vmem:[#allocation5 + $0x80] sm:$0xff]
    %v69 = vld [vmem:[#allocation5 + $0x88] sm:$0xff]
    %v70 = vld [vmem:[#allocation5 + $0x90] sm:$0xff]
    %v71 = vld [vmem:[#allocation5 + $0x98] sm:$0xff]
    %v72 = vld [vmem:[#allocation5 + $0xa0] sm:$0xff]
    %v73 = vld [vmem:[#allocation5 + $0xa8] sm:$0xff]
    %v74 = vld [vmem:[#allocation5 + $0xb0] sm:$0xff]
    %v75 = vld [vmem:[#allocation5 + $0xb8] sm:$0xff]
    %v76 = vld [vmem:[#allocation5 + $0xc0] sm:$0xff]
    %v77 = vld [vmem:[#allocation5 + $0xc8] sm:$0xff]
    %v78 = vld [vmem:[#allocation5 + $0xd0] sm:$0xff]
    %v79 = vld [vmem:[#allocation5 + $0xd8] sm:$0xff]
    %v80 = vld [vmem:[#allocation5 + $0xe0] sm:$0xff]
    %v81 = vld [vmem:[#allocation5 + $0xe8] sm:$0xff]
    %v82 = vld [vmem:[#allocation5 + $0xf0] sm:$0xff]
    %v83 = vld [vmem:[#allocation5 + $0xf8] sm:$0xff]
    %v116 = vunpack.c.l.b16 %v52
    %v117 = vunpack.c.h.b16 %v52
    %v118 = vunpack.c.l.b16 %v53
    %v119 = vunpack.c.h.b16 %v53
    %v120 = vunpack.c.l.b16 %v54
    %v121 = vunpack.c.h.b16 %v54
    %v122 = vunpack.c.l.b16 %v55
    %v123 = vunpack.c.h.b16 %v55
    %v124 = vunpack.c.l.b16 %v56
    %v125 = vunpack.c.h.b16 %v56
    %v126 = vunpack.c.l.b16 %v57
    %v127 = vunpack.c.h.b16 %v57
    %v128 = vunpack.c.l.b16 %v58
    %v129 = vunpack.c.h.b16 %v58
    %v130 = vunpack.c.l.b16 %v59
    %v131 = vunpack.c.h.b16 %v59
    %v132 = vunpack.c.l.b16 %v60
    %v133 = vunpack.c.h.b16 %v60
    %v134 = vunpack.c.l.b16 %v61
    %v135 = vunpack.c.h.b16 %v61
    %v136 = vunpack.c.l.b16 %v62
    %v137 = vunpack.c.h.b16 %v62
    %v138 = vunpack.c.l.b16 %v63
    %v139 = vunpack.c.h.b16 %v63
    %v140 = vunpack.c.l.b16 %v64
    %v141 = vunpack.c.h.b16 %v64
    %v142 = vunpack.c.l.b16 %v65
    %v143 = vunpack.c.h.b16 %v65
    %v144 = vunpack.c.l.b16 %v66
    %v145 = vunpack.c.h.b16 %v66
    %v146 = vunpack.c.l.b16 %v67
    %v147 = vunpack.c.h.b16 %v67
    %v148 = vunpack.c.l.b16 %v68
    %v149 = vunpack.c.h.b16 %v68
    %v150 = vunpack.c.l.b16 %v69
    %v151 = vunpack.c.h.b16 %v69
    %v152 = vunpack.c.l.b16 %v70
    %v153 = vunpack.c.h.b16 %v70
    %v154 = vunpack.c.l.b16 %v71
    %v155 = vunpack.c.h.b16 %v71
    %v156 = vunpack.c.l.b16 %v72
    %v157 = vunpack.c.h.b16 %v72
    %v158 = vunpack.c.l.b16 %v73
    %v159 = vunpack.c.h.b16 %v73
    %v160 = vunpack.c.l.b16 %v74
    %v161 = vunpack.c.h.b16 %v74
    %v162 = vunpack.c.l.b16 %v75
    %v163 = vunpack.c.h.b16 %v75
    %v164 = vunpack.c.l.b16 %v76
    %v165 = vunpack.c.h.b16 %v76
    %v166 = vunpack.c.l.b16 %v77
    %v167 = vunpack.c.h.b16 %v77
    %v168 = vunpack.c.l.b16 %v78
    %v169 = vunpack.c.h.b16 %v78
    %v170 = vunpack.c.l.b16 %v79
    %v171 = vunpack.c.h.b16 %v79
    %v172 = vunpack.c.l.b16 %v80
    %v173 = vunpack.c.h.b16 %v80
    %v174 = vunpack.c.l.b16 %v81
    %v175 = vunpack.c.h.b16 %v81
    %v176 = vunpack.c.l.b16 %v82
    %v177 = vunpack.c.h.b16 %v82
    %v178 = vunpack.c.l.b16 %v83
    %v179 = vunpack.c.h.b16 %v83
    %v180 = vpack.c.b16 %v120, %v116
    %v181 = vpack.c.b16 %v121, %v117
    %v182 = vpack.c.b16 %v122, %v118
    %v183 = vpack.c.b16 %v123, %v119
    %v184 = vpack.c.b16 %v128, %v124
    %v185 = vpack.c.b16 %v129, %v125
    %v186 = vpack.c.b16 %v130, %v126
    %v187 = vpack.c.b16 %v131, %v127
    %v188 = vpack.c.b16 %v136, %v132
    %v189 = vpack.c.b16 %v137, %v133
    %v190 = vpack.c.b16 %v138, %v134
    %v191 = vpack.c.b16 %v139, %v135
    %v192 = vpack.c.b16 %v144, %v140
    %v193 = vpack.c.b16 %v145, %v141
    %v194 = vpack.c.b16 %v146, %v142
    %v195 = vpack.c.b16 %v147, %v143
    %v196 = vpack.c.b16 %v152, %v148
    %v197 = vpack.c.b16 %v153, %v149
    %v198 = vpack.c.b16 %v154, %v150
    %v199 = vpack.c.b16 %v155, %v151
    %v200 = vpack.c.b16 %v160, %v156
    %v201 = vpack.c.b16 %v161, %v157
    %v202 = vpack.c.b16 %v162, %v158
    %v203 = vpack.c.b16 %v163, %v159
    %v204 = vpack.c.b16 %v168, %v164
    %v205 = vpack.c.b16 %v169, %v165
    %v206 = vpack.c.b16 %v170, %v166
    %v207 = vpack.c.b16 %v171, %v167
    %v208 = vpack.c.b16 %v176, %v172
    %v209 = vpack.c.b16 %v177, %v173
    %v210 = vpack.c.b16 %v178, %v174
    %v211 = vpack.c.b16 %v179, %v175
    %244 = vmatprep.subr.bf16.mxu0 %v181
    %245 = vmatpush1.bf16.msra.mxu0 %v180
    %246 = vmatprep.subr.bf16.mxu0 %v185
    %247 = vmatpush1.bf16.msra.mxu0 %v184
    %248 = vmatprep.subr.bf16.mxu0 %v189
    %249 = vmatpush1.bf16.msra.mxu0 %v188
    %250 = vmatprep.subr.bf16.mxu0 %v193
    %251 = vmatpush1.bf16.msra.mxu0 %v192
    %252 = vmatprep.subr.bf16.mxu0 %v197
    %253 = vmatpush1.bf16.msra.mxu0 %v196
    %254 = vmatprep.subr.bf16.mxu0 %v201
    %255 = vmatpush1.bf16.msra.mxu0 %v200
    %256 = vmatprep.subr.bf16.mxu0 %v205
    %257 = vmatpush1.bf16.msra.mxu0 %v204
    %258 = vmatprep.subr.bf16.mxu0 %v209
    %259 = vmatpush1.bf16.msra.mxu0 %v208
    %260 = vmatprep.subr.bf16.mxu0 0
    %261 = vmatpush1.bf16.msra.mxu0 0
    %262 = vmatprep.subr.bf16.mxu0 0
    %263 = vmatpush1.bf16.msra.mxu0 0
    %264 = vmatprep.subr.bf16.mxu0 0
    %265 = vmatpush1.bf16.msra.mxu0 0
    %266 = vmatprep.subr.bf16.mxu0 0
    %267 = vmatpush1.bf16.msra.mxu0 0
    %268 = vmatprep.subr.bf16.mxu0 0
    %269 = vmatpush1.bf16.msra.mxu0 0
    %270 = vmatprep.subr.bf16.mxu0 0
    %271 = vmatpush1.bf16.msra.mxu0 0
    %272 = vmatprep.subr.bf16.mxu0 0
    %273 = vmatpush1.bf16.msra.mxu0 0
    %274 = vmatprep.subr.bf16.mxu0 0
    %275 = vmatpush1.bf16.msra.mxu0 0
    %276 = vmatprep.mubr.bf16.mxu0 0
    %277 = vmatmul.mubr.bf16.gmra.mrb[0].mxu0 0
    %v278 = vpop.f32.mrb[0].mxu0
    %v279 = vadd.f32 0.0, %v278
    %v280 = vpop.f32.mrb[0].mxu0
    %v281 = vadd.f32 0.0, %v280
    %v282 = vpop.f32.mrb[0].mxu0
    %v283 = vpop.f32.mrb[0].mxu0
    %284 = vdwg.mxu0
    %285 = vmatprep.subr.bf16.mxu0 %v183
    %286 = vmatpush1.bf16.msra.mxu0 %v182
    %287 = vmatprep.subr.bf16.mxu0 %v187
    %288 = vmatpush1.bf16.msra.mxu0 %v186
    %289 = vmatprep.subr.bf16.mxu0 %v191
    %290 = vmatpush1.bf16.msra.mxu0 %v190
    %291 = vmatprep.subr.bf16.mxu0 %v195
    %292 = vmatpush1.bf16.msra.mxu0 %v194
    %293 = vmatprep.subr.bf16.mxu0 %v199
    %294 = vmatpush1.bf16.msra.mxu0 %v198
    %295 = vmatprep.subr.bf16.mxu0 %v203
    %296 = vmatpush1.bf16.msra.mxu0 %v202
    %297 = vmatprep.subr.bf16.mxu0 %v207
    %298 = vmatpush1.bf16.msra.mxu0 %v206
    %299 = vmatprep.subr.bf16.mxu0 %v211
    %300 = vmatpush1.bf16.msra.mxu0 %v210
    %301 = vmatprep.subr.bf16.mxu0 0
    %302 = vmatpush1.bf16.msra.mxu0 0
    %303 = vmatprep.subr.bf16.mxu0 0
    %304 = vmatpush1.bf16.msra.mxu0 0
    %305 = vmatprep.subr.bf16.mxu0 0
    %306 = vmatpush1.bf16.msra.mxu0 0
    %307 = vmatprep.subr.bf16.mxu0 0
    %308 = vmatpush1.bf16.msra.mxu0 0
    %309 = vmatprep.subr.bf16.mxu0 0
    %310 = vmatpush1.bf16.msra.mxu0 0
    %311 = vmatprep.subr.bf16.mxu0 0
    %312 = vmatpush1.bf16.msra.mxu0 0
    %313 = vmatprep.subr.bf16.mxu0 0
    %314 = vmatpush1.bf16.msra.mxu0 0
    %315 = vmatprep.subr.bf16.mxu0 0
    %316 = vmatpush1.bf16.msra.mxu0 0
    %317 = vmatprep.mubr.bf16.mxu0 0
    %318 = vmatmul.mubr.bf16.gmra.mrb[0].mxu0 0
    %v319 = vpop.f32.mrb[0].mxu0
    %v320 = vadd.f32 0.0, %v319
    %v321 = vpop.f32.mrb[0].mxu0
    %v322 = vadd.f32 0.0, %v321
    %v323 = vpop.f32.mrb[0].mxu0
    %v324 = vpop.f32.mrb[0].mxu0
    %325 = vdwg.mxu0
    %v326 = vadd.f32 %v48, %v279
    %v327 = vadd.f32 %v49, %v281
    %v328 = vadd.f32 %v50, %v320
    %v329 = vadd.f32 %v51, %v322
    %v330 = vxor.u32 %v326, 2147483648
    %v331 = vxor.u32 %v327, 2147483648
    %v332 = vxor.u32 %v328, 2147483648
    %v333 = vmul.f32 %v330, 1.442695
    %v334 = vpow.pop %v333
    %v335 = vmul.f32 %v331, 1.442695
    %v336 = vpow.pop %v335
    %v337 = vmul.f32 %v332, 1.442695
    %v338 = vpow.pop %v337
    %v339 = vadd.f32 %v334, 1.0
    %v340 = vadd.f32 %v336, 1.0
    %v341 = vadd.f32 %v338, 1.0
    %v342 = vrcp.pop %v339
    %v343 = vmul.f32 1.0, %v342
    %v344 = vrcp.pop %v340
    %v345 = vmul.f32 1.0, %v344
    %v346 = vrcp.pop %v341
    %v347 = vmul.f32 1.0, %v346
    %v348 = vtanh.pop %v329
    %v349 = vmul.f32 %v345, 0.0
    %v350 = vmul.f32 %v343, %v348
    %v351 = vadd.f32 %v349, %v350
    %v352 = vtanh.pop %v351
    %v353 = vmul.f32 %v347, %v352
    %354 = vst [vmem:[#allocation7] sm:$0xff] %v353
    %s355 = smul.u32 1, 4
    %s356 = smul.addr %s355, 8
    %s357 = scalar_lea.vmem [#allocation2], %s356
    %v358 = vld [vmem:[%s357] sm:$0xff]
    %v359 = vld [vmem:[%s357 + $0x8] sm:$0xff]
    %v360 = vld [vmem:[%s357 + $0x10] sm:$0xff]
    %v361 = vld [vmem:[%s357 + $0x18] sm:$0xff]
    %v362 = vpack.c.bf16 %v353, %v353
    %v363 = vld [vmem:[#allocation5] sm:$0xff]
    %v364 = vld [vmem:[#allocation5 + $0x8] sm:$0xff]
    %v365 = vld [vmem:[#allocation5 + $0x10] sm:$0xff]
    %v366 = vld [vmem:[#allocation5 + $0x18] sm:$0xff]
    %v367 = vld [vmem:[#allocation5 + $0x20] sm:$0xff]
    %v368 = vld [vmem:[#allocation5 + $0x28] sm:$0xff]
    %v369 = vld [vmem:[#allocation5 + $0x30] sm:$0xff]
    %v370 = vld [vmem:[#allocation5 + $0x38] sm:$0xff]
    %v371 = vld [vmem:[#allocation5 + $0x40] sm:$0xff]
    %v372 = vld [vmem:[#allocation5 + $0x48] sm:$0xff]
    %v373 = vld [vmem:[#allocation5 + $0x50] sm:$0xff]
    %v374 = vld [vmem:[#allocation5 + $0x58] sm:$0xff]
    %v375 = vld [vmem:[#allocation5 + $0x60] sm:$0xff]
    %v376 = vld [vmem:[#allocation5 + $0x68] sm:$0xff]
    %v377 = vld [vmem:[#allocation5 + $0x70] sm:$0xff]
    %v378 = vld [vmem:[#allocation5 + $0x78] sm:$0xff]
    %v379 = vld [vmem:[#allocation5 + $0x80] sm:$0xff]
    %v380 = vld [vmem:[#allocation5 + $0x88] sm:$0xff]
    %v381 = vld [vmem:[#allocation5 + $0x90] sm:$0xff]
    %v382 = vld [vmem:[#allocation5 + $0x98] sm:$0xff]
    %v383 = vld [vmem:[#allocation5 + $0xa0] sm:$0xff]
    %v384 = vld [vmem:[#allocation5 + $0xa8] sm:$0xff]
    %v385 = vld [vmem:[#allocation5 + $0xb0] sm:$0xff]
    %v386 = vld [vmem:[#allocation5 + $0xb8] sm:$0xff]
    %v387 = vld [vmem:[#allocation5 + $0xc0] sm:$0xff]
    %v388 = vld [vmem:[#allocation5 + $0xc8] sm:$0xff]
    %v389 = vld [vmem:[#allocation5 + $0xd0] sm:$0xff]
    %v390 = vld [vmem:[#allocation5 + $0xd8] sm:$0xff]
    %v391 = vld [vmem:[#allocation5 + $0xe0] sm:$0xff]
    %v392 = vld [vmem:[#allocation5 + $0xe8] sm:$0xff]
    %v393 = vld [vmem:[#allocation5 + $0xf0] sm:$0xff]
    %v394 = vld [vmem:[#allocation5 + $0xf8] sm:$0xff]
    %v427 = vunpack.c.l.b16 %v363
    %v428 = vunpack.c.h.b16 %v363
    %v429 = vunpack.c.l.b16 %v364
    %v430 = vunpack.c.h.b16 %v364
    %v431 = vunpack.c.l.b16 %v365
    %v432 = vunpack.c.h.b16 %v365
    %v433 = vunpack.c.l.b16 %v366
    %v434 = vunpack.c.h.b16 %v366
    %v435 = vunpack.c.l.b16 %v367
    %v436 = vunpack.c.h.b16 %v367
    %v437 = vunpack.c.l.b16 %v368
    %v438 = vunpack.c.h.b16 %v368
    %v439 = vunpack.c.l.b16 %v369
    %v440 = vunpack.c.h.b16 %v369
    %v441 = vunpack.c.l.b16 %v370
    %v442 = vunpack.c.h.b16 %v370
    %v443 = vunpack.c.l.b16 %v371
    %v444 = vunpack.c.h.b16 %v371
    %v445 = vunpack.c.l.b16 %v372
    %v446 = vunpack.c.h.b16 %v372
    %v447 = vunpack.c.l.b16 %v373
    %v448 = vunpack.c.h.b16 %v373
    %v449 = vunpack.c.l.b16 %v374
    %v450 = vunpack.c.h.b16 %v374
    %v451 = vunpack.c.l.b16 %v375
    %v452 = vunpack.c.h.b16 %v375
    %v453 = vunpack.c.l.b16 %v376
    %v454 = vunpack.c.h.b16 %v376
    %v455 = vunpack.c.l.b16 %v377
    %v456 = vunpack.c.h.b16 %v377
    %v457 = vunpack.c.l.b16 %v378
    %v458 = vunpack.c.h.b16 %v378
    %v459 = vunpack.c.l.b16 %v379
    %v460 = vunpack.c.h.b16 %v379
    %v461 = vunpack.c.l.b16 %v380
    %v462 = vunpack.c.h.b16 %v380
    %v463 = vunpack.c.l.b16 %v381
    %v464 = vunpack.c.h.b16 %v381
    %v465 = vunpack.c.l.b16 %v382
    %v466 = vunpack.c.h.b16 %v382
    %v467 = vunpack.c.l.b16 %v383
    %v468 = vunpack.c.h.b16 %v383
    %v469 = vunpack.c.l.b16 %v384
    %v470 = vunpack.c.h.b16 %v384
    %v471 = vunpack.c.l.b16 %v385
    %v472 = vunpack.c.h.b16 %v385
    %v473 = vunpack.c.l.b16 %v386
    %v474 = vunpack.c.h.b16 %v386
    %v475 = vunpack.c.l.b16 %v387
    %v476 = vunpack.c.h.b16 %v387
    %v477 = vunpack.c.l.b16 %v388
    %v478 = vunpack.c.h.b16 %v388
    %v479 = vunpack.c.l.b16 %v389
    %v480 = vunpack.c.h.b16 %v389
    %v481 = vunpack.c.l.b16 %v390
    %v482 = vunpack.c.h.b16 %v390
    %v483 = vunpack.c.l.b16 %v391
    %v484 = vunpack.c.h.b16 %v391
    %v485 = vunpack.c.l.b16 %v392
    %v486 = vunpack.c.h.b16 %v392
    %v487 = vunpack.c.l.b16 %v393
    %v488 = vunpack.c.h.b16 %v393
    %v489 = vunpack.c.l.b16 %v394
    %v490 = vunpack.c.h.b16 %v394
    %v491 = vpack.c.b16 %v431, %v427
    %v492 = vpack.c.b16 %v432, %v428
    %v493 = vpack.c.b16 %v433, %v429
    %v494 = vpack.c.b16 %v434, %v430
    %v495 = vpack.c.b16 %v439, %v435
    %v496 = vpack.c.b16 %v440, %v436
    %v497 = vpack.c.b16 %v441, %v437
    %v498 = vpack.c.b16 %v442, %v438
    %v499 = vpack.c.b16 %v447, %v443
    %v500 = vpack.c.b16 %v448, %v444
    %v501 = vpack.c.b16 %v449, %v445
    %v502 = vpack.c.b16 %v450, %v446
    %v503 = vpack.c.b16 %v455, %v451
    %v504 = vpack.c.b16 %v456, %v452
    %v505 = vpack.c.b16 %v457, %v453
    %v506 = vpack.c.b16 %v458, %v454
    %v507 = vpack.c.b16 %v463, %v459
    %v508 = vpack.c.b16 %v464, %v460
    %v509 = vpack.c.b16 %v465, %v461
    %v510 = vpack.c.b16 %v466, %v462
    %v511 = vpack.c.b16 %v471, %v467
    %v512 = vpack.c.b16 %v472, %v468
    %v513 = vpack.c.b16 %v473, %v469
    %v514 = vpack.c.b16 %v474, %v470
    %v515 = vpack.c.b16 %v479, %v475
    %v516 = vpack.c.b16 %v480, %v476
    %v517 = vpack.c.b16 %v481, %v477
    %v518 = vpack.c.b16 %v482, %v478
    %v519 = vpack.c.b16 %v487, %v483
    %v520 = vpack.c.b16 %v488, %v484
    %v521 = vpack.c.b16 %v489, %v485
    %v522 = vpack.c.b16 %v490, %v486
    %555 = vmatprep.subr.bf16.mxu0 %v492
    %556 = vmatpush1.bf16.msra.mxu0 %v491
    %557 = vmatprep.subr.bf16.mxu0 %v496
    %558 = vmatpush1.bf16.msra.mxu0 %v495
    %559 = vmatprep.subr.bf16.mxu0 %v500
    %560 = vmatpush1.bf16.msra.mxu0 %v499
    %561 = vmatprep.subr.bf16.mxu0 %v504
    %562 = vmatpush1.bf16.msra.mxu0 %v503
    %563 = vmatprep.subr.bf16.mxu0 %v508
    %564 = vmatpush1.bf16.msra.mxu0 %v507
    %565 = vmatprep.subr.bf16.mxu0 %v512
    %566 = vmatpush1.bf16.msra.mxu0 %v511
    %567 = vmatprep.subr.bf16.mxu0 %v516
    %568 = vmatpush1.bf16.msra.mxu0 %v515
    %569 = vmatprep.subr.bf16.mxu0 %v520
    %570 = vmatpush1.bf16.msra.mxu0 %v519
    %571 = vmatprep.subr.bf16.mxu0 0
    %572 = vmatpush1.bf16.msra.mxu0 0
    %573 = vmatprep.subr.bf16.mxu0 0
    %574 = vmatpush1.bf16.msra.mxu0 0
    %575 = vmatprep.subr.bf16.mxu0 0
    %576 = vmatpush1.bf16.msra.mxu0 0
    %577 = vmatprep.subr.bf16.mxu0 0
    %578 = vmatpush1.bf16.msra.mxu0 0
    %579 = vmatprep.subr.bf16.mxu0 0
    %580 = vmatpush1.bf16.msra.mxu0 0
    %581 = vmatprep.subr.bf16.mxu0 0
    %582 = vmatpush1.bf16.msra.mxu0 0
    %583 = vmatprep.subr.bf16.mxu0 0
    %584 = vmatpush1.bf16.msra.mxu0 0
    %585 = vmatprep.subr.bf16.mxu0 0
    %586 = vmatpush1.bf16.msra.mxu0 0
    %587 = vmatprep.mubr.bf16.mxu0 0
    %588 = vmatmul.mubr.bf16.gmra.mrb[0].mxu0 %v362
    %v589 = vpop.f32.mrb[0].mxu0
    %v590 = vadd.f32 0.0, %v589
    %v591 = vpop.f32.mrb[0].mxu0
    %v592 = vadd.f32 0.0, %v591
    %v593 = vpop.f32.mrb[0].mxu0
    %v594 = vpop.f32.mrb[0].mxu0
    %595 = vdwg.mxu0
    %596 = vmatprep.subr.bf16.mxu0 %v494
    %597 = vmatpush1.bf16.msra.mxu0 %v493
    %598 = vmatprep.subr.bf16.mxu0 %v498
    %599 = vmatpush1.bf16.msra.mxu0 %v497
    %600 = vmatprep.subr.bf16.mxu0 %v502
    %601 = vmatpush1.bf16.msra.mxu0 %v501
    %602 = vmatprep.subr.bf16.mxu0 %v506
    %603 = vmatpush1.bf16.msra.mxu0 %v505
    %604 = vmatprep.subr.bf16.mxu0 %v510
    %605 = vmatpush1.bf16.msra.mxu0 %v509
    %606 = vmatprep.subr.bf16.mxu0 %v514
    %607 = vmatpush1.bf16.msra.mxu0 %v513
    %608 = vmatprep.subr.bf16.mxu0 %v518
    %609 = vmatpush1.bf16.msra.mxu0 %v517
    %610 = vmatprep.subr.bf16.mxu0 %v522
    %611 = vmatpush1.bf16.msra.mxu0 %v521
    %612 = vmatprep.subr.bf16.mxu0 0
    %613 = vmatpush1.bf16.msra.mxu0 0
    %614 = vmatprep.subr.bf16.mxu0 0
    %615 = vmatpush1.bf16.msra.mxu0 0
    %616 = vmatprep.subr.bf16.mxu0 0
    %617 = vmatpush1.bf16.msra.mxu0 0
    %618 = vmatprep.subr.bf16.mxu0 0
    %619 = vmatpush1.bf16.msra.mxu0 0
    %620 = vmatprep.subr.bf16.mxu0 0
    %621 = vmatpush1.bf16.msra.mxu0 0
    %622 = vmatprep.subr.bf16.mxu0 0
    %623 = vmatpush1.bf16.msra.mxu0 0
    %624 = vmatprep.subr.bf16.mxu0 0
    %625 = vmatpush1.bf16.msra.mxu0 0
    %626 = vmatprep.subr.bf16.mxu0 0
    %627 = vmatpush1.bf16.msra.mxu0 0
    %628 = vmatprep.mubr.bf16.mxu0 0
    %629 = vmatmul.mubr.bf16.gmra.mrb[0].mxu0 %v362
    %v630 = vpop.f32.mrb[0].mxu0
    %v631 = vadd.f32 0.0, %v630
    %v632 = vpop.f32.mrb[0].mxu0
    %v633 = vadd.f32 0.0, %v632
    %v634 = vpop.f32.mrb[0].mxu0
    %v635 = vpop.f32.mrb[0].mxu0
    %636 = vdwg.mxu0
    %v637 = vadd.f32 %v358, %v590
    %v638 = vadd.f32 %v359, %v592
    %v639 = vadd.f32 %v360, %v631
    %v640 = vadd.f32 %v361, %v633
    %v641 = vxor.u32 %v637, 2147483648
    %v642 = vxor.u32 %v638, 2147483648
    %v643 = vxor.u32 %v639, 2147483648
    %v644 = vmul.f32 %v641, 1.442695
    %v645 = vpow.pop %v644
    %v646 = vmul.f32 %v642, 1.442695
    %v647 = vpow.pop %v646
    %v648 = vmul.f32 %v643, 1.442695
    %v649 = vpow.pop %v648
    %v650 = vadd.f32 %v645, 1.0
    %v651 = vadd.f32 %v647, 1.0
    %v652 = vadd.f32 %v649, 1.0
    %v653 = vrcp.pop %v650
    %v654 = vmul.f32 1.0, %v653
    %v655 = vrcp.pop %v651
    %v656 = vmul.f32 1.0, %v655
    %v657 = vrcp.pop %v652
    %v658 = vmul.f32 1.0, %v657
    %v659 = vtanh.pop %v640
    %v660 = vmul.f32 %v656, %v351
    %v661 = vmul.f32 %v654, %v659
    %v662 = vadd.f32 %v660, %v661
    %v663 = vtanh.pop %v662
    %v664 = vmul.f32 %v658, %v663
    %s665 = scalar_lea.vmem [#allocation7], 8
    %666 = vst [vmem:[%s665] sm:$0xff] %v664
    %s667 = smul.u32 2, 4
    %s668 = smul.addr %s667, 8
    %s669 = scalar_lea.vmem [#allocation2], %s668
    %v670 = vld [vmem:[%s669] sm:$0xff]
    %v671 = vld [vmem:[%s669 + $0x8] sm:$0xff]
    %v672 = vld [vmem:[%s669 + $0x10] sm:$0xff]
    %v673 = vld [vmem:[%s669 + $0x18] sm:$0xff]
    %v674 = vpack.c.bf16 %v664, %v664
    %v675 = vld [vmem:[#allocation5] sm:$0xff]
    %v676 = vld [vmem:[#allocation5 + $0x8] sm:$0xff]
    %v677 = vld [vmem:[#allocation5 + $0x10] sm:$0xff]
    %v678 = vld [vmem:[#allocation5 + $0x18] sm:$0xff]
    %v679 = vld [vmem:[#allocation5 + $0x20] sm:$0xff]
    %v680 = vld [vmem:[#allocation5 + $0x28] sm:$0xff]
    %v681 = vld [vmem:[#allocation5 + $0x30] sm:$0xff]
    %v682 = vld [vmem:[#allocation5 + $0x38] sm:$0xff]
    %v683 = vld [vmem:[#allocation5 + $0x40] sm:$0xff]
    %v684 = vld [vmem:[#allocation5 + $0x48] sm:$0xff]
    %v685 = vld [vmem:[#allocation5 + $0x50] sm:$0xff]
    %v686 = vld [vmem:[#allocation5 + $0x58] sm:$0xff]
    %v687 = vld [vmem:[#allocation5 + $0x60] sm:$0xff]
    %v688 = vld [vmem:[#allocation5 + $0x68] sm:$0xff]
    %v689 = vld [vmem:[#allocation5 + $0x70] sm:$0xff]
    %v690 = vld [vmem:[#allocation5 + $0x78] sm:$0xff]
    %v691 = vld [vmem:[#allocation5 + $0x80] sm:$0xff]
    %v692 = vld [vmem:[#allocation5 + $0x88] sm:$0xff]
    %v693 = vld [vmem:[#allocation5 + $0x90] sm:$0xff]
    %v694 = vld [vmem:[#allocation5 + $0x98] sm:$0xff]
    %v695 = vld [vmem:[#allocation5 + $0xa0] sm:$0xff]
    %v696 = vld [vmem:[#allocation5 + $0xa8] sm:$0xff]
    %v697 = vld [vmem:[#allocation5 + $0xb0] sm:$0xff]
    %v698 = vld [vmem:[#allocation5 + $0xb8] sm:$0xff]
    %v699 = vld [vmem:[#allocation5 + $0xc0] sm:$0xff]
    %v700 = vld [vmem:[#allocation5 + $0xc8] sm:$0xff]
    %v701 = vld [vmem:[#allocation5 + $0xd0] sm:$0xff]
    %v702 = vld [vmem:[#allocation5 + $0xd8] sm:$0xff]
    %v703 = vld [vmem:[#allocation5 + $0xe0] sm:$0xff]
    %v704 = vld [vmem:[#allocation5 + $0xe8] sm:$0xff]
    %v705 = vld [vmem:[#allocation5 + $0xf0] sm:$0xff]
    %v706 = vld [vmem:[#allocation5 + $0xf8] sm:$0xff]
    %v739 = vunpack.c.l.b16 %v675
    %v740 = vunpack.c.h.b16 %v675
    %v741 = vunpack.c.l.b16 %v676
    %v742 = vunpack.c.h.b16 %v676
    %v743 = vunpack.c.l.b16 %v677
    %v744 = vunpack.c.h.b16 %v677
    %v745 = vunpack.c.l.b16 %v678
    %v746 = vunpack.c.h.b16 %v678
    %v747 = vunpack.c.l.b16 %v679
    %v748 = vunpack.c.h.b16 %v679
    %v749 = vunpack.c.l.b16 %v680
    %v750 = vunpack.c.h.b16 %v680
    %v751 = vunpack.c.l.b16 %v681
    %v752 = vunpack.c.h.b16 %v681
    %v753 = vunpack.c.l.b16 %v682
    %v754 = vunpack.c.h.b16 %v682
    %v755 = vunpack.c.l.b16 %v683
    %v756 = vunpack.c.h.b16 %v683
    %v757 = vunpack.c.l.b16 %v684
    %v758 = vunpack.c.h.b16 %v684
    %v759 = vunpack.c.l.b16 %v685
    %v760 = vunpack.c.h.b16 %v685
    %v761 = vunpack.c.l.b16 %v686
    %v762 = vunpack.c.h.b16 %v686
    %v763 = vunpack.c.l.b16 %v687
    %v764 = vunpack.c.h.b16 %v687
    %v765 = vunpack.c.l.b16 %v688
    %v766 = vunpack.c.h.b16 %v688
    %v767 = vunpack.c.l.b16 %v689
    %v768 = vunpack.c.h.b16 %v689
    %v769 = vunpack.c.l.b16 %v690
    %v770 = vunpack.c.h.b16 %v690
    %v771 = vunpack.c.l.b16 %v691
    %v772 = vunpack.c.h.b16 %v691
    %v773 = vunpack.c.l.b16 %v692
    %v774 = vunpack.c.h.b16 %v692
    %v775 = vunpack.c.l.b16 %v693
    %v776 = vunpack.c.h.b16 %v693
    %v777 = vunpack.c.l.b16 %v694
    %v778 = vunpack.c.h.b16 %v694
    %v779 = vunpack.c.l.b16 %v695
    %v780 = vunpack.c.h.b16 %v695
    %v781 = vunpack.c.l.b16 %v696
    %v782 = vunpack.c.h.b16 %v696
    %v783 = vunpack.c.l.b16 %v697
    %v784 = vunpack.c.h.b16 %v697
    %v785 = vunpack.c.l.b16 %v698
    %v786 = vunpack.c.h.b16 %v698
    %v787 = vunpack.c.l.b16 %v699
    %v788 = vunpack.c.h.b16 %v699
    %v789 = vunpack.c.l.b16 %v700
    %v790 = vunpack.c.h.b16 %v700
    %v791 = vunpack.c.l.b16 %v701
    %v792 = vunpack.c.h.b16 %v701
    %v793 = vunpack.c.l.b16 %v702
    %v794 = vunpack.c.h.b16 %v702
    %v795 = vunpack.c.l.b16 %v703
    %v796 = vunpack.c.h.b16 %v703
    %v797 = vunpack.c.l.b16 %v704
    %v798 = vunpack.c.h.b16 %v704
    %v799 = vunpack.c.l.b16 %v705
    %v800 = vunpack.c.h.b16 %v705
    %v801 = vunpack.c.l.b16 %v706
    %v802 = vunpack.c.h.b16 %v706
    %v803 = vpack.c.b16 %v743, %v739
    %v804 = vpack.c.b16 %v744, %v740
    %v805 = vpack.c.b16 %v745, %v741
    %v806 = vpack.c.b16 %v746, %v742
    %v807 = vpack.c.b16 %v751, %v747
    %v808 = vpack.c.b16 %v752, %v748
    %v809 = vpack.c.b16 %v753, %v749
    %v810 = vpack.c.b16 %v754, %v750
    %v811 = vpack.c.b16 %v759, %v755
    %v812 = vpack.c.b16 %v760, %v756
    %v813 = vpack.c.b16 %v761, %v757
    %v814 = vpack.c.b16 %v762, %v758
    %v815 = vpack.c.b16 %v767, %v763
    %v816 = vpack.c.b16 %v768, %v764
    %v817 = vpack.c.b16 %v769, %v765
    %v818 = vpack.c.b16 %v770, %v766
    %v819 = vpack.c.b16 %v775, %v771
    %v820 = vpack.c.b16 %v776, %v772
    %v821 = vpack.c.b16 %v777, %v773
    %v822 = vpack.c.b16 %v778, %v774
    %v823 = vpack.c.b16 %v783, %v779
    %v824 = vpack.c.b16 %v784, %v780
    %v825 = vpack.c.b16 %v785, %v781
    %v826 = vpack.c.b16 %v786, %v782
    %v827 = vpack.c.b16 %v791, %v787
    %v828 = vpack.c.b16 %v792, %v788
    %v829 = vpack.c.b16 %v793, %v789
    %v830 = vpack.c.b16 %v794, %v790
    %v831 = vpack.c.b16 %v799, %v795
    %v832 = vpack.c.b16 %v800, %v796
    %v833 = vpack.c.b16 %v801, %v797
    %v834 = vpack.c.b16 %v802, %v798
    %867 = vmatprep.subr.bf16.mxu0 %v804
    %868 = vmatpush1.bf16.msra.mxu0 %v803
    %869 = vmatprep.subr.bf16.mxu0 %v808
    %870 = vmatpush1.bf16.msra.mxu0 %v807
    %871 = vmatprep.subr.bf16.mxu0 %v812
    %872 = vmatpush1.bf16.msra.mxu0 %v811
    %873 = vmatprep.subr.bf16.mxu0 %v816
    %874 = vmatpush1.bf16.msra.mxu0 %v815
    %875 = vmatprep.subr.bf16.mxu0 %v820
    %876 = vmatpush1.bf16.msra.mxu0 %v819
    %877 = vmatprep.subr.bf16.mxu0 %v824
    %878 = vmatpush1.bf16.msra.mxu0 %v823
    %879 = vmatprep.subr.bf16.mxu0 %v828
    %880 = vmatpush1.bf16.msra.mxu0 %v827
    %881 = vmatprep.subr.bf16.mxu0 %v832
    %882 = vmatpush1.bf16.msra.mxu0 %v831
    %883 = vmatprep.subr.bf16.mxu0 0
    %884 = vmatpush1.bf16.msra.mxu0 0
    %885 = vmatprep.subr.bf16.mxu0 0
    %886 = vmatpush1.bf16.msra.mxu0 0
    %887 = vmatprep.subr.bf16.mxu0 0
    %888 = vmatpush1.bf16.msra.mxu0 0
    %889 = vmatprep.subr.bf16.mxu0 0
    %890 = vmatpush1.bf16.msra.mxu0 0
    %891 = vmatprep.subr.bf16.mxu0 0
    %892 = vmatpush1.bf16.msra.mxu0 0
    %893 = vmatprep.subr.bf16.mxu0 0
    %894 = vmatpush1.bf16.msra.mxu0 0
    %895 = vmatprep.subr.bf16.mxu0 0
    %896 = vmatpush1.bf16.msra.mxu0 0
    %897 = vmatprep.subr.bf16.mxu0 0
    %898 = vmatpush1.bf16.msra.mxu0 0
    %899 = vmatprep.mubr.bf16.mxu0 0
    %900 = vmatmul.mubr.bf16.gmra.mrb[0].mxu0 %v674
    %v901 = vpop.f32.mrb[0].mxu0
    %v902 = vadd.f32 0.0, %v901
    %v903 = vpop.f32.mrb[0].mxu0
    %v904 = vadd.f32 0.0, %v903
    %v905 = vpop.f32.mrb[0].mxu0
    %v906 = vpop.f32.mrb[0].mxu0
    %907 = vdwg.mxu0
    %908 = vmatprep.subr.bf16.mxu0 %v806
    %909 = vmatpush1.bf16.msra.mxu0 %v805
    %910 = vmatprep.subr.bf16.mxu0 %v810
    %911 = vmatpush1.bf16.msra.mxu0 %v809
    %912 = vmatprep.subr.bf16.mxu0 %v814
    %913 = vmatpush1.bf16.msra.mxu0 %v813
    %914 = vmatprep.subr.bf16.mxu0 %v818
    %915 = vmatpush1.bf16.msra.mxu0 %v817
    %916 = vmatprep.subr.bf16.mxu0 %v822
    %917 = vmatpush1.bf16.msra.mxu0 %v821
    %918 = vmatprep.subr.bf16.mxu0 %v826
    %919 = vmatpush1.bf16.msra.mxu0 %v825
    %920 = vmatprep.subr.bf16.mxu0 %v830
    %921 = vmatpush1.bf16.msra.mxu0 %v829
    %922 = vmatprep.subr.bf16.mxu0 %v834
    %923 = vmatpush1.bf16.msra.mxu0 %v833
    %924 = vmatprep.subr.bf16.mxu0 0
    %925 = vmatpush1.bf16.msra.mxu0 0
    %926 = vmatprep.subr.bf16.mxu0 0
    %927 = vmatpush1.bf16.msra.mxu0 0
    %928 = vmatprep.subr.bf16.mxu0 0
    %929 = vmatpush1.bf16.msra.mxu0 0
    %930 = vmatprep.subr.bf16.mxu0 0
    %931 = vmatpush1.bf16.msra.mxu0 0
    %932 = vmatprep.subr.bf16.mxu0 0
    %933 = vmatpush1.bf16.msra.mxu0 0
    %934 = vmatprep.subr.bf16.mxu0 0
    %935 = vmatpush1.bf16.msra.mxu0 0
    %936 = vmatprep.subr.bf16.mxu0 0
    %937 = vmatpush1.bf16.msra.mxu0 0
    %938 = vmatprep.subr.bf16.mxu0 0
    %939 = vmatpush1.bf16.msra.mxu0 0
    %940 = vmatprep.mubr.bf16.mxu0 0
    %941 = vmatmul.mubr.bf16.gmra.mrb[0].mxu0 %v674
    %v942 = vpop.f32.mrb[0].mxu0
    %v943 = vadd.f32 0.0, %v942
    %v944 = vpop.f32.mrb[0].mxu0
    %v945 = vadd.f32 0.0, %v944
    %v946 = vpop.f32.mrb[0].mxu0
    %v947 = vpop.f32.mrb[0].mxu0
    %948 = vdwg.mxu0
    %v949 = vadd.f32 %v670, %v902
    %v950 = vadd.f32 %v671, %v904
    %v951 = vadd.f32 %v672, %v943
    %v952 = vadd.f32 %v673, %v945
    %v953 = vxor.u32 %v949, 2147483648
    %v954 = vxor.u32 %v950, 2147483648
    %v955 = vxor.u32 %v951, 2147483648
    %v956 = vmul.f32 %v953, 1.442695
    %v957 = vpow.pop %v956
    %v958 = vmul.f32 %v954, 1.442695
    %v959 = vpow.pop %v958
    %v960 = vmul.f32 %v955, 1.442695
    %v961 = vpow.pop %v960
    %v962 = vadd.f32 %v957, 1.0
    %v963 = vadd.f32 %v959, 1.0
    %v964 = vadd.f32 %v961, 1.0
    %v965 = vrcp.pop %v962
    %v966 = vmul.f32 1.0, %v965
    %v967 = vrcp.pop %v963
    %v968 = vmul.f32 1.0, %v967
    %v969 = vrcp.pop %v964
    %v970 = vmul.f32 1.0, %v969
    %v971 = vtanh.pop %v952
    %v972 = vmul.f32 %v968, %v662
    %v973 = vmul.f32 %v966, %v971
    %v974 = vadd.f32 %v972, %v973
    %v975 = vtanh.pop %v974
    %v976 = vmul.f32 %v970, %v975
    %s977 = scalar_lea.vmem [#allocation7], 16
    %978 = vst [vmem:[%s977] sm:$0xff] %v976
    %s979 = smul.u32 3, 4
    %s980 = smul.addr %s979, 8
    %s981 = scalar_lea.vmem [#allocation2], %s980
    %v982 = vld [vmem:[%s981] sm:$0xff]
    %v983 = vld [vmem:[%s981 + $0x8] sm:$0xff]
    %v984 = vld [vmem:[%s981 + $0x10] sm:$0xff]
    %v985 = vld [vmem:[%s981 + $0x18] sm:$0xff]
    %v986 = vpack.c.bf16 %v976, %v976
    %v987 = vld [vmem:[#allocation5] sm:$0xff]
    %v988 = vld [vmem:[#allocation5 + $0x8] sm:$0xff]
    %v989 = vld [vmem:[#allocation5 + $0x10] sm:$0xff]
    %v990 = vld [vmem:[#allocation5 + $0x18] sm:$0xff]
    %v991 = vld [vmem:[#allocation5 + $0x20] sm:$0xff]
    %v992 = vld [vmem:[#allocation5 + $0x28] sm:$0xff]
    %v993 = vld [vmem:[#allocation5 + $0x30] sm:$0xff]
    %v994 = vld [vmem:[#allocation5 + $0x38] sm:$0xff]
    %v995 = vld [vmem:[#allocation5 + $0x40] sm:$0xff]
    %v996 = vld [vmem:[#allocation5 + $0x48] sm:$0xff]
    %v997 = vld [vmem:[#allocation5 + $0x50] sm:$0xff]
    %v998 = vld [vmem:[#allocation5 + $0x58] sm:$0xff]
    %v999 = vld [vmem:[#allocation5 + $0x60] sm:$0xff]
    %v1000 = vld [vmem:[#allocation5 + $0x68] sm:$0xff]
    %v1001 = vld [vmem:[#allocation5 + $0x70] sm:$0xff]
    %v1002 = vld [vmem:[#allocation5 + $0x78] sm:$0xff]
    %v1003 = vld [vmem:[#allocation5 + $0x80] sm:$0xff]
    %v1004 = vld [vmem:[#allocation5 + $0x88] sm:$0xff]
    %v1005 = vld [vmem:[#allocation5 + $0x90] sm:$0xff]
    %v1006 = vld [vmem:[#allocation5 + $0x98] sm:$0xff]
    %v1007 = vld [vmem:[#allocation5 + $0xa0] sm:$0xff]
    %v1008 = vld [vmem:[#allocation5 + $0xa8] sm:$0xff]
    %v1009 = vld [vmem:[#allocation5 + $0xb0] sm:$0xff]
    %v1010 = vld [vmem:[#allocation5 + $0xb8] sm:$0xff]
    %v1011 = vld [vmem:[#allocation5 + $0xc0] sm:$0xff]
    %v1012 = vld [vmem:[#allocation5 + $0xc8] sm:$0xff]
    %v1013 = vld [vmem:[#allocation5 + $0xd0] sm:$0xff]
    %v1014 = vld [vmem:[#allocation5 + $0xd8] sm:$0xff]
    %v1015 = vld [vmem:[#allocation5 + $0xe0] sm:$0xff]
    %v1016 = vld [vmem:[#allocation5 + $0xe8] sm:$0xff]
    %v1017 = vld [vmem:[#allocation5 + $0xf0] sm:$0xff]
    %v1018 = vld [vmem:[#allocation5 + $0xf8] sm:$0xff]
    %v1051 = vunpack.c.l.b16 %v987
    %v1052 = vunpack.c.h.b16 %v987
    %v1053 = vunpack.c.l.b16 %v988
    %v1054 = vunpack.c.h.b16 %v988
    %v1055 = vunpack.c.l.b16 %v989
    %v1056 = vunpack.c.h.b16 %v989
    %v1057 = vunpack.c.l.b16 %v990
    %v1058 = vunpack.c.h.b16 %v990
    %v1059 = vunpack.c.l.b16 %v991
    %v1060 = vunpack.c.h.b16 %v991
    %v1061 = vunpack.c.l.b16 %v992
    %v1062 = vunpack.c.h.b16 %v992
    %v1063 = vunpack.c.l.b16 %v993
    %v1064 = vunpack.c.h.b16 %v993
    %v1065 = vunpack.c.l.b16 %v994
    %v1066 = vunpack.c.h.b16 %v994
    %v1067 = vunpack.c.l.b16 %v995
    %v1068 = vunpack.c.h.b16 %v995
    %v1069 = vunpack.c.l.b16 %v996
    %v1070 = vunpack.c.h.b16 %v996
    %v1071 = vunpack.c.l.b16 %v997
    %v1072 = vunpack.c.h.b16 %v997
    %v1073 = vunpack.c.l.b16 %v998
    %v1074 = vunpack.c.h.b16 %v998
    %v1075 = vunpack.c.l.b16 %v999
    %v1076 = vunpack.c.h.b16 %v999
    %v1077 = vunpack.c.l.b16 %v1000
    %v1078 = vunpack.c.h.b16 %v1000
    %v1079 = vunpack.c.l.b16 %v1001
    %v1080 = vunpack.c.h.b16 %v1001
    %v1081 = vunpack.c.l.b16 %v1002
    %v1082 = vunpack.c.h.b16 %v1002
    %v1083 = vunpack.c.l.b16 %v1003
    %v1084 = vunpack.c.h.b16 %v1003
    %v1085 = vunpack.c.l.b16 %v1004
    %v1086 = vunpack.c.h.b16 %v1004
    %v1087 = vunpack.c.l.b16 %v1005
    %v1088 = vunpack.c.h.b16 %v1005
    %v1089 = vunpack.c.l.b16 %v1006
    %v1090 = vunpack.c.h.b16 %v1006
    %v1091 = vunpack.c.l.b16 %v1007
    %v1092 = vunpack.c.h.b16 %v1007
    %v1093 = vunpack.c.l.b16 %v1008
    %v1094 = vunpack.c.h.b16 %v1008
    %v1095 = vunpack.c.l.b16 %v1009
    %v1096 = vunpack.c.h.b16 %v1009
    %v1097 = vunpack.c.l.b16 %v1010
    %v1098 = vunpack.c.h.b16 %v1010
    %v1099 = vunpack.c.l.b16 %v1011
    %v1100 = vunpack.c.h.b16 %v1011
    %v1101 = vunpack.c.l.b16 %v1012
    %v1102 = vunpack.c.h.b16 %v1012
    %v1103 = vunpack.c.l.b16 %v1013
    %v1104 = vunpack.c.h.b16 %v1013
    %v1105 = vunpack.c.l.b16 %v1014
    %v1106 = vunpack.c.h.b16 %v1014
    %v1107 = vunpack.c.l.b16 %v1015
    %v1108 = vunpack.c.h.b16 %v1015
    %v1109 = vunpack.c.l.b16 %v1016
    %v1110 = vunpack.c.h.b16 %v1016
    %v1111 = vunpack.c.l.b16 %v1017
    %v1112 = vunpack.c.h.b16 %v1017
    %v1113 = vunpack.c.l.b16 %v1018
    %v1114 = vunpack.c.h.b16 %v1018
    %v1115 = vpack.c.b16 %v1055, %v1051
    %v1116 = vpack.c.b16 %v1056, %v1052
    %v1117 = vpack.c.b16 %v1057, %v1053
    %v1118 = vpack.c.b16 %v1058, %v1054
    %v1119 = vpack.c.b16 %v1063, %v1059
    %v1120 = vpack.c.b16 %v1064, %v1060
    %v1121 = vpack.c.b16 %v1065, %v1061
    %v1122 = vpack.c.b16 %v1066, %v1062
    %v1123 = vpack.c.b16 %v1071, %v1067
    %v1124 = vpack.c.b16 %v1072, %v1068
    %v1125 = vpack.c.b16 %v1073, %v1069
    %v1126 = vpack.c.b16 %v1074, %v1070
    %v1127 = vpack.c.b16 %v1079, %v1075
    %v1128 = vpack.c.b16 %v1080, %v1076
    %v1129 = vpack.c.b16 %v1081, %v1077
    %v1130 = vpack.c.b16 %v1082, %v1078
    %v1131 = vpack.c.b16 %v1087, %v1083
    %v1132 = vpack.c.b16 %v1088, %v1084
    %v1133 = vpack.c.b16 %v1089, %v1085
    %v1134 = vpack.c.b16 %v1090, %v1086
    %v1135 = vpack.c.b16 %v1095, %v1091
    %v1136 = vpack.c.b16 %v1096, %v1092
    %v1137 = vpack.c.b16 %v1097, %v1093
    %v1138 = vpack.c.b16 %v1098, %v1094
    %v1139 = vpack.c.b16 %v1103, %v1099
    %v1140 = vpack.c.b16 %v1104, %v1100
    %v1141 = vpack.c.b16 %v1105, %v1101
    %v1142 = vpack.c.b16 %v1106, %v1102
    %v1143 = vpack.c.b16 %v1111, %v1107
    %v1144 = vpack.c.b16 %v1112, %v1108
    %v1145 = vpack.c.b16 %v1113, %v1109
    %v1146 = vpack.c.b16 %v1114, %v1110
    %1179 = vmatprep.subr.bf16.mxu0 %v1116
    %1180 = vmatpush1.bf16.msra.mxu0 %v1115
    %1181 = vmatprep.subr.bf16.mxu0 %v1120
    %1182 = vmatpush1.bf16.msra.mxu0 %v1119
    %1183 = vmatprep.subr.bf16.mxu0 %v1124
    %1184 = vmatpush1.bf16.msra.mxu0 %v1123
    %1185 = vmatprep.subr.bf16.mxu0 %v1128
    %1186 = vmatpush1.bf16.msra.mxu0 %v1127
    %1187 = vmatprep.subr.bf16.mxu0 %v1132
    %1188 = vmatpush1.bf16.msra.mxu0 %v1131
    %1189 = vmatprep.subr.bf16.mxu0 %v1136
    %1190 = vmatpush1.bf16.msra.mxu0 %v1135
    %1191 = vmatprep.subr.bf16.mxu0 %v1140
    %1192 = vmatpush1.bf16.msra.mxu0 %v1139
    %1193 = vmatprep.subr.bf16.mxu0 %v1144
    %1194 = vmatpush1.bf16.msra.mxu0 %v1143
    %1195 = vmatprep.subr.bf16.mxu0 0
    %1196 = vmatpush1.bf16.msra.mxu0 0
    %1197 = vmatprep.subr.bf16.mxu0 0
    %1198 = vmatpush1.bf16.msra.mxu0 0
    %1199 = vmatprep.subr.bf16.mxu0 0
    %1200 = vmatpush1.bf16.msra.mxu0 0
    %1201 = vmatprep.subr.bf16.mxu0 0
    %1202 = vmatpush1.bf16.msra.mxu0 0
    %1203 = vmatprep.subr.bf16.mxu0 0
    %1204 = vmatpush1.bf16.msra.mxu0 0
    %1205 = vmatprep.subr.bf16.mxu0 0
    %1206 = vmatpush1.bf16.msra.mxu0 0
    %1207 = vmatprep.subr.bf16.mxu0 0
    %1208 = vmatpush1.bf16.msra.mxu0 0
    %1209 = vmatprep.subr.bf16.mxu0 0
    %1210 = vmatpush1.bf16.msra.mxu0 0
    %1211 = vmatprep.mubr.bf16.mxu0 0
    %1212 = vmatmul.mubr.bf16.gmra.mrb[0].mxu0 %v986
    %v1213 = vpop.f32.mrb[0].mxu0
    %v1214 = vadd.f32 0.0, %v1213
    %v1215 = vpop.f32.mrb[0].mxu0
    %v1216 = vadd.f32 0.0, %v1215
    %v1217 = vpop.f32.mrb[0].mxu0
    %v1218 = vpop.f32.mrb[0].mxu0
    %1219 = vdwg.mxu0
    %1220 = vmatprep.subr.bf16.mxu0 %v1118
    %1221 = vmatpush1.bf16.msra.mxu0 %v1117
    %1222 = vmatprep.subr.bf16.mxu0 %v1122
    %1223 = vmatpush1.bf16.msra.mxu0 %v1121
    %1224 = vmatprep.subr.bf16.mxu0 %v1126
    %1225 = vmatpush1.bf16.msra.mxu0 %v1125
    %1226 = vmatprep.subr.bf16.mxu0 %v1130
    %1227 = vmatpush1.bf16.msra.mxu0 %v1129
    %1228 = vmatprep.subr.bf16.mxu0 %v1134
    %1229 = vmatpush1.bf16.msra.mxu0 %v1133
    %1230 = vmatprep.subr.bf16.mxu0 %v1138
    %1231 = vmatpush1.bf16.msra.mxu0 %v1137
    %1232 = vmatprep.subr.bf16.mxu0 %v1142
    %1233 = vmatpush1.bf16.msra.mxu0 %v1141
    %1234 = vmatprep.subr.bf16.mxu0 %v1146
    %1235 = vmatpush1.bf16.msra.mxu0 %v1145
    %1236 = vmatprep.subr.bf16.mxu0 0
    %1237 = vmatpush1.bf16.msra.mxu0 0
    %1238 = vmatprep.subr.bf16.mxu0 0
    %1239 = vmatpush1.bf16.msra.mxu0 0
    %1240 = vmatprep.subr.bf16.mxu0 0
    %1241 = vmatpush1.bf16.msra.mxu0 0
    %1242 = vmatprep.subr.bf16.mxu0 0
    %1243 = vmatpush1.bf16.msra.mxu0 0
    %1244 = vmatprep.subr.bf16.mxu0 0
    %1245 = vmatpush1.bf16.msra.mxu0 0
    %1246 = vmatprep.subr.bf16.mxu0 0
    %1247 = vmatpush1.bf16.msra.mxu0 0
    %1248 = vmatprep.subr.bf16.mxu0 0
    %1249 = vmatpush1.bf16.msra.mxu0 0
    %1250 = vmatprep.subr.bf16.mxu0 0
    %1251 = vmatpush1.bf16.msra.mxu0 0
    %1252 = vmatprep.mubr.bf16.mxu0 0
    %1253 = vmatmul.mubr.bf16.gmra.mrb[0].mxu0 %v986
    %v1254 = vpop.f32.mrb[0].mxu0
    %v1255 = vadd.f32 0.0, %v1254
    %v1256 = vpop.f32.mrb[0].mxu0
    %v1257 = vadd.f32 0.0, %v1256
    %v1258 = vpop.f32.mrb[0].mxu0
    %v1259 = vpop.f32.mrb[0].mxu0
    %1260 = vdwg.mxu0
    %v1261 = vadd.f32 %v982, %v1214
    %v1262 = vadd.f32 %v983, %v1216
    %v1263 = vadd.f32 %v984, %v1255
    %v1264 = vadd.f32 %v985, %v1257
    %v1265 = vxor.u32 %v1261, 2147483648
    %v1266 = vxor.u32 %v1262, 2147483648
    %v1267 = vxor.u32 %v1263, 2147483648
    %v1268 = vmul.f32 %v1265, 1.442695
    %v1269 = vpow.pop %v1268
    %v1270 = vmul.f32 %v1266, 1.442695
    %v1271 = vpow.pop %v1270
    %v1272 = vmul.f32 %v1267, 1.442695
    %v1273 = vpow.pop %v1272
    %v1274 = vadd.f32 %v1269, 1.0
    %v1275 = vadd.f32 %v1271, 1.0
    %v1276 = vadd.f32 %v1273, 1.0
    %v1277 = vrcp.pop %v1274
    %v1278 = vmul.f32 1.0, %v1277
    %v1279 = vrcp.pop %v1275
    %v1280 = vmul.f32 1.0, %v1279
    %v1281 = vrcp.pop %v1276
    %v1282 = vmul.f32 1.0, %v1281
    %v1283 = vtanh.pop %v1264
    %v1284 = vmul.f32 %v1280, %v974
    %v1285 = vmul.f32 %v1278, %v1283
    %v1286 = vadd.f32 %v1284, %v1285
    %v1287 = vtanh.pop %v1286
    %v1288 = vmul.f32 %v1282, %v1287
    %s1289 = scalar_lea.vmem [#allocation7], 24
    %1290 = vst [vmem:[%s1289] sm:$0xff] %v1288
    %s1291 = smul.u32 4, 4
    %s1292 = smul.addr %s1291, 8
    %s1293 = scalar_lea.vmem [#allocation2], %s1292
    %v1294 = vld [vmem:[%s1293] sm:$0xff]
    %v1295 = vld [vmem:[%s1293 + $0x8] sm:$0xff]
    %v1296 = vld [vmem:[%s1293 + $0x10] sm:$0xff]
    %v1297 = vld [vmem:[%s1293 + $0x18] sm:$0xff]
    %v1298 = vpack.c.bf16 %v1288, %v1288
    %v1299 = vld [vmem:[#allocation5] sm:$0xff]
    %v1300 = vld [vmem:[#allocation5 + $0x8] sm:$0xff]
    %v1301 = vld [vmem:[#allocation5 + $0x10] sm:$0xff]
    %v1302 = vld [vmem:[#allocation5 + $0x18] sm:$0xff]
    %v1303 = vld [vmem:[#allocation5 + $0x20] sm:$0xff]
    %v1304 = vld [vmem:[#allocation5 + $0x28] sm:$0xff]
    %v1305 = vld [vmem:[#allocation5 + $0x30] sm:$0xff]
    %v1306 = vld [vmem:[#allocation5 + $0x38] sm:$0xff]
    %v1307 = vld [vmem:[#allocation5 + $0x40] sm:$0xff]
    %v1308 = vld [vmem:[#allocation5 + $0x48] sm:$0xff]
    %v1309 = vld [vmem:[#allocation5 + $0x50] sm:$0xff]
    %v1310 = vld [vmem:[#allocation5 + $0x58] sm:$0xff]
    %v1311 = vld [vmem:[#allocation5 + $0x60] sm:$0xff]
    %v1312 = vld [vmem:[#allocation5 + $0x68] sm:$0xff]
    %v1313 = vld [vmem:[#allocation5 + $0x70] sm:$0xff]
    %v1314 = vld [vmem:[#allocation5 + $0x78] sm:$0xff]
    %v1315 = vld [vmem:[#allocation5 + $0x80] sm:$0xff]
    %v1316 = vld [vmem:[#allocation5 + $0x88] sm:$0xff]
    %v1317 = vld [vmem:[#allocation5 + $0x90] sm:$0xff]
    %v1318 = vld [vmem:[#allocation5 + $0x98] sm:$0xff]
    %v1319 = vld [vmem:[#allocation5 + $0xa0] sm:$0xff]
    %v1320 = vld [vmem:[#allocation5 + $0xa8] sm:$0xff]
    %v1321 = vld [vmem:[#allocation5 + $0xb0] sm:$0xff]
    %v1322 = vld [vmem:[#allocation5 + $0xb8] sm:$0xff]
    %v1323 = vld [vmem:[#allocation5 + $0xc0] sm:$0xff]
    %v1324 = vld [vmem:[#allocation5 + $0xc8] sm:$0xff]
    %v1325 = vld [vmem:[#allocation5 + $0xd0] sm:$0xff]
    %v1326 = vld [vmem:[#allocation5 + $0xd8] sm:$0xff]
    %v1327 = vld [vmem:[#allocation5 + $0xe0] sm:$0xff]
    %v1328 = vld [vmem:[#allocation5 + $0xe8] sm:$0xff]
    %v1329 = vld [vmem:[#allocation5 + $0xf0] sm:$0xff]
    %v1330 = vld [vmem:[#allocation5 + $0xf8] sm:$0xff]
    %v1363 = vunpack.c.l.b16 %v1299
    %v1364 = vunpack.c.h.b16 %v1299
    %v1365 = vunpack.c.l.b16 %v1300
    %v1366 = vunpack.c.h.b16 %v1300
    %v1367 = vunpack.c.l.b16 %v1301
    %v1368 = vunpack.c.h.b16 %v1301
    %v1369 = vunpack.c.l.b16 %v1302
    %v1370 = vunpack.c.h.b16 %v1302
    %v1371 = vunpack.c.l.b16 %v1303
    %v1372 = vunpack.c.h.b16 %v1303
    %v1373 = vunpack.c.l.b16 %v1304
    %v1374 = vunpack.c.h.b16 %v1304
    %v1375 = vunpack.c.l.b16 %v1305
    %v1376 = vunpack.c.h.b16 %v1305
    %v1377 = vunpack.c.l.b16 %v1306
    %v1378 = vunpack.c.h.b16 %v1306
    %v1379 = vunpack.c.l.b16 %v1307
    %v1380 = vunpack.c.h.b16 %v1307
    %v1381 = vunpack.c.l.b16 %v1308
    %v1382 = vunpack.c.h.b16 %v1308
    %v1383 = vunpack.c.l.b16 %v1309
    %v1384 = vunpack.c.h.b16 %v1309
    %v1385 = vunpack.c.l.b16 %v1310
    %v1386 = vunpack.c.h.b16 %v1310
    %v1387 = vunpack.c.l.b16 %v1311
    %v1388 = vunpack.c.h.b16 %v1311
    %v1389 = vunpack.c.l.b16 %v1312
    %v1390 = vunpack.c.h.b16 %v1312
    %v1391 = vunpack.c.l.b16 %v1313
    %v1392 = vunpack.c.h.b16 %v1313
    %v1393 = vunpack.c.l.b16 %v1314
    %v1394 = vunpack.c.h.b16 %v1314
    %v1395 = vunpack.c.l.b16 %v1315
    %v1396 = vunpack.c.h.b16 %v1315
    %v1397 = vunpack.c.l.b16 %v1316
    %v1398 = vunpack.c.h.b16 %v1316
    %v1399 = vunpack.c.l.b16 %v1317
    %v1400 = vunpack.c.h.b16 %v1317
    %v1401 = vunpack.c.l.b16 %v1318
    %v1402 = vunpack.c.h.b16 %v1318
    %v1403 = vunpack.c.l.b16 %v1319
    %v1404 = vunpack.c.h.b16 %v1319
    %v1405 = vunpack.c.l.b16 %v1320
    %v1406 = vunpack.c.h.b16 %v1320
    %v1407 = vunpack.c.l.b16 %v1321
    %v1408 = vunpack.c.h.b16 %v1321
    %v1409 = vunpack.c.l.b16 %v1322
    %v1410 = vunpack.c.h.b16 %v1322
    %v1411 = vunpack.c.l.b16 %v1323
    %v1412 = vunpack.c.h.b16 %v1323
    %v1413 = vunpack.c.l.b16 %v1324
    %v1414 = vunpack.c.h.b16 %v1324
    %v1415 = vunpack.c.l.b16 %v1325
    %v1416 = vunpack.c.h.b16 %v1325
    %v1417 = vunpack.c.l.b16 %v1326
    %v1418 = vunpack.c.h.b16 %v1326
    %v1419 = vunpack.c.l.b16 %v1327
    %v1420 = vunpack.c.h.b16 %v1327
    %v1421 = vunpack.c.l.b16 %v1328
    %v1422 = vunpack.c.h.b16 %v1328
    %v1423 = vunpack.c.l.b16 %v1329
    %v1424 = vunpack.c.h.b16 %v1329
    %v1425 = vunpack.c.l.b16 %v1330
    %v1426 = vunpack.c.h.b16 %v1330
    %v1427 = vpack.c.b16 %v1367, %v1363
    %v1428 = vpack.c.b16 %v1368, %v1364
    %v1429 = vpack.c.b16 %v1369, %v1365
    %v1430 = vpack.c.b16 %v1370, %v1366
    %v1431 = vpack.c.b16 %v1375, %v1371
    %v1432 = vpack.c.b16 %v1376, %v1372
    %v1433 = vpack.c.b16 %v1377, %v1373
    %v1434 = vpack.c.b16 %v1378, %v1374
    %v1435 = vpack.c.b16 %v1383, %v1379
    %v1436 = vpack.c.b16 %v1384, %v1380
    %v1437 = vpack.c.b16 %v1385, %v1381
    %v1438 = vpack.c.b16 %v1386, %v1382
    %v1439 = vpack.c.b16 %v1391, %v1387
    %v1440 = vpack.c.b16 %v1392, %v1388
    %v1441 = vpack.c.b16 %v1393, %v1389
    %v1442 = vpack.c.b16 %v1394, %v1390
    %v1443 = vpack.c.b16 %v1399, %v1395
    %v1444 = vpack.c.b16 %v1400, %v1396
    %v1445 = vpack.c.b16 %v1401, %v1397
    %v1446 = vpack.c.b16 %v1402, %v1398
    %v1447 = vpack.c.b16 %v1407, %v1403
    %v1448 = vpack.c.b16 %v1408, %v1404
    %v1449 = vpack.c.b16 %v1409, %v1405
    %v1450 = vpack.c.b16 %v1410, %v1406
    %v1451 = vpack.c.b16 %v1415, %v1411
    %v1452 = vpack.c.b16 %v1416, %v1412
    %v1453 = vpack.c.b16 %v1417, %v1413
    %v1454 = vpack.c.b16 %v1418, %v1414
    %v1455 = vpack.c.b16 %v1423, %v1419
    %v1456 = vpack.c.b16 %v1424, %v1420
    %v1457 = vpack.c.b16 %v1425, %v1421
    %v1458 = vpack.c.b16 %v1426, %v1422
    %1491 = vmatprep.subr.bf16.mxu0 %v1428
    %1492 = vmatpush1.bf16.msra.mxu0 %v1427
    %1493 = vmatprep.subr.bf16.mxu0 %v1432
    %1494 = vmatpush1.bf16.msra.mxu0 %v1431
    %1495 = vmatprep.subr.bf16.mxu0 %v1436
    %1496 = vmatpush1.bf16.msra.mxu0 %v1435
    %1497 = vmatprep.subr.bf16.mxu0 %v1440
    %1498 = vmatpush1.bf16.msra.mxu0 %v1439
    %1499 = vmatprep.subr.bf16.mxu0 %v1444
    %1500 = vmatpush1.bf16.msra.mxu0 %v1443
    %1501 = vmatprep.subr.bf16.mxu0 %v1448
    %1502 = vmatpush1.bf16.msra.mxu0 %v1447
    %1503 = vmatprep.subr.bf16.mxu0 %v1452
    %1504 = vmatpush1.bf16.msra.mxu0 %v1451
    %1505 = vmatprep.subr.bf16.mxu0 %v1456
    %1506 = vmatpush1.bf16.msra.mxu0 %v1455
    %1507 = vmatprep.subr.bf16.mxu0 0
    %1508 = vmatpush1.bf16.msra.mxu0 0
    %1509 = vmatprep.subr.bf16.mxu0 0
    %1510 = vmatpush1.bf16.msra.mxu0 0
    %1511 = vmatprep.subr.bf16.mxu0 0
    %1512 = vmatpush1.bf16.msra.mxu0 0
    %1513 = vmatprep.subr.bf16.mxu0 0
    %1514 = vmatpush1.bf16.msra.mxu0 0
    %1515 = vmatprep.subr.bf16.mxu0 0
    %1516 = vmatpush1.bf16.msra.mxu0 0
    %1517 = vmatprep.subr.bf16.mxu0 0
    %1518 = vmatpush1.bf16.msra.mxu0 0
    %1519 = vmatprep.subr.bf16.mxu0 0
    %1520 = vmatpush1.bf16.msra.mxu0 0
    %1521 = vmatprep.subr.bf16.mxu0 0
    %1522 = vmatpush1.bf16.msra.mxu0 0
    %1523 = vmatprep.mubr.bf16.mxu0 0
    %1524 = vmatmul.mubr.bf16.gmra.mrb[0].mxu0 %v1298
    %v1525 = vpop.f32.mrb[0].mxu0
    %v1526 = vadd.f32 0.0, %v1525
    %v1527 = vpop.f32.mrb[0].mxu0
    %v1528 = vadd.f32 0.0, %v1527
    %v1529 = vpop.f32.mrb[0].mxu0
    %v1530 = vpop.f32.mrb[0].mxu0
    %1531 = vdwg.mxu0
    %1532 = vmatprep.subr.bf16.mxu0 %v1430
    %1533 = vmatpush1.bf16.msra.mxu0 %v1429
    %1534 = vmatprep.subr.bf16.mxu0 %v1434
    %1535 = vmatpush1.bf16.msra.mxu0 %v1433
    %1536 = vmatprep.subr.bf16.mxu0 %v1438
    %1537 = vmatpush1.bf16.msra.mxu0 %v1437
    %1538 = vmatprep.subr.bf16.mxu0 %v1442
    %1539 = vmatpush1.bf16.msra.mxu0 %v1441
    %1540 = vmatprep.subr.bf16.mxu0 %v1446
    %1541 = vmatpush1.bf16.msra.mxu0 %v1445
    %1542 = vmatprep.subr.bf16.mxu0 %v1450
    %1543 = vmatpush1.bf16.msra.mxu0 %v1449
    %1544 = vmatprep.subr.bf16.mxu0 %v1454
    %1545 = vmatpush1.bf16.msra.mxu0 %v1453
    %1546 = vmatprep.subr.bf16.mxu0 %v1458
    %1547 = vmatpush1.bf16.msra.mxu0 %v1457
    %1548 = vmatprep.subr.bf16.mxu0 0
    %1549 = vmatpush1.bf16.msra.mxu0 0
    %1550 = vmatprep.subr.bf16.mxu0 0
    %1551 = vmatpush1.bf16.msra.mxu0 0
    %1552 = vmatprep.subr.bf16.mxu0 0
    %1553 = vmatpush1.bf16.msra.mxu0 0
    %1554 = vmatprep.subr.bf16.mxu0 0
    %1555 = vmatpush1.bf16.msra.mxu0 0
    %1556 = vmatprep.subr.bf16.mxu0 0
    %1557 = vmatpush1.bf16.msra.mxu0 0
    %1558 = vmatprep.subr.bf16.mxu0 0
    %1559 = vmatpush1.bf16.msra.mxu0 0
    %1560 = vmatprep.subr.bf16.mxu0 0
    %1561 = vmatpush1.bf16.msra.mxu0 0
    %1562 = vmatprep.subr.bf16.mxu0 0
    %1563 = vmatpush1.bf16.msra.mxu0 0
    %1564 = vmatprep.mubr.bf16.mxu0 0
    %1565 = vmatmul.mubr.bf16.gmra.mrb[0].mxu0 %v1298
    %v1566 = vpop.f32.mrb[0].mxu0
    %v1567 = vadd.f32 0.0, %v1566
    %v1568 = vpop.f32.mrb[0].mxu0
    %v1569 = vadd.f32 0.0, %v1568
    %v1570 = vpop.f32.mrb[0].mxu0
    %v1571 = vpop.f32.mrb[0].mxu0
    %1572 = vdwg.mxu0
    %v1573 = vadd.f32 %v1294, %v1526
    %v1574 = vadd.f32 %v1295, %v1528
    %v1575 = vadd.f32 %v1296, %v1567
    %v1576 = vadd.f32 %v1297, %v1569
    %v1577 = vxor.u32 %v1573, 2147483648
    %v1578 = vxor.u32 %v1574, 2147483648
    %v1579 = vxor.u32 %v1575, 2147483648
    %v1580 = vmul.f32 %v1577, 1.442695
    %v1581 = vpow.pop %v1580
    %v1582 = vmul.f32 %v1578, 1.442695
    %v1583 = vpow.pop %v1582
    %v1584 = vmul.f32 %v1579, 1.442695
    %v1585 = vpow.pop %v1584
    %v1586 = vadd.f32 %v1581, 1.0
    %v1587 = vadd.f32 %v1583, 1.0
    %v1588 = vadd.f32 %v1585, 1.0
    %v1589 = vrcp.pop %v1586
    %v1590 = vmul.f32 1.0, %v1589
    %v1591 = vrcp.pop %v1587
    %v1592 = vmul.f32 1.0, %v1591
    %v1593 = vrcp.pop %v1588
    %v1594 = vmul.f32 1.0, %v1593
    %v1595 = vtanh.pop %v1576
    %v1596 = vmul.f32 %v1592, %v1286
    %v1597 = vmul.f32 %v1590, %v1595
    %v1598 = vadd.f32 %v1596, %v1597
    %v1599 = vtanh.pop %v1598
    %v1600 = vmul.f32 %v1594, %v1599
    %s1601 = scalar_lea.vmem [#allocation7], 32
    %1602 = vst [vmem:[%s1601] sm:$0xff] %v1600
    %s1603 = smul.u32 5, 4
    %s1604 = smul.addr %s1603, 8
    %s1605 = scalar_lea.vmem [#allocation2], %s1604
    %v1606 = vld [vmem:[%s1605] sm:$0xff]
    %v1607 = vld [vmem:[%s1605 + $0x8] sm:$0xff]
    %v1608 = vld [vmem:[%s1605 + $0x10] sm:$0xff]
    %v1609 = vld [vmem:[%s1605 + $0x18] sm:$0xff]
    %v1610 = vpack.c.bf16 %v1600, %v1600
    %v1611 = vld [vmem:[#allocation5] sm:$0xff]
    %v1612 = vld [vmem:[#allocation5 + $0x8] sm:$0xff]
    %v1613 = vld [vmem:[#allocation5 + $0x10] sm:$0xff]
    %v1614 = vld [vmem:[#allocation5 + $0x18] sm:$0xff]
    %v1615 = vld [vmem:[#allocation5 + $0x20] sm:$0xff]
    %v1616 = vld [vmem:[#allocation5 + $0x28] sm:$0xff]
    %v1617 = vld [vmem:[#allocation5 + $0x30] sm:$0xff]
    %v1618 = vld [vmem:[#allocation5 + $0x38] sm:$0xff]
    %v1619 = vld [vmem:[#allocation5 + $0x40] sm:$0xff]
    %v1620 = vld [vmem:[#allocation5 + $0x48] sm:$0xff]
    %v1621 = vld [vmem:[#allocation5 + $0x50] sm:$0xff]
    %v1622 = vld [vmem:[#allocation5 + $0x58] sm:$0xff]
    %v1623 = vld [vmem:[#allocation5 + $0x60] sm:$0xff]
    %v1624 = vld [vmem:[#allocation5 + $0x68] sm:$0xff]
    %v1625 = vld [vmem:[#allocation5 + $0x70] sm:$0xff]
    %v1626 = vld [vmem:[#allocation5 + $0x78] sm:$0xff]
    %v1627 = vld [vmem:[#allocation5 + $0x80] sm:$0xff]
    %v1628 = vld [vmem:[#allocation5 + $0x88] sm:$0xff]
    %v1629 = vld [vmem:[#allocation5 + $0x90] sm:$0xff]
    %v1630 = vld [vmem:[#allocation5 + $0x98] sm:$0xff]
    %v1631 = vld [vmem:[#allocation5 + $0xa0] sm:$0xff]
    %v1632 = vld [vmem:[#allocation5 + $0xa8] sm:$0xff]
    %v1633 = vld [vmem:[#allocation5 + $0xb0] sm:$0xff]
    %v1634 = vld [vmem:[#allocation5 + $0xb8] sm:$0xff]
    %v1635 = vld [vmem:[#allocation5 + $0xc0] sm:$0xff]
    %v1636 = vld [vmem:[#allocation5 + $0xc8] sm:$0xff]
    %v1637 = vld [vmem:[#allocation5 + $0xd0] sm:$0xff]
    %v1638 = vld [vmem:[#allocation5 + $0xd8] sm:$0xff]
    %v1639 = vld [vmem:[#allocation5 + $0xe0] sm:$0xff]
    %v1640 = vld [vmem:[#allocation5 + $0xe8] sm:$0xff]
    %v1641 = vld [vmem:[#allocation5 + $0xf0] sm:$0xff]
    %v1642 = vld [vmem:[#allocation5 + $0xf8] sm:$0xff]
    %v1675 = vunpack.c.l.b16 %v1611
    %v1676 = vunpack.c.h.b16 %v1611
    %v1677 = vunpack.c.l.b16 %v1612
    %v1678 = vunpack.c.h.b16 %v1612
    %v1679 = vunpack.c.l.b16 %v1613
    %v1680 = vunpack.c.h.b16 %v1613
    %v1681 = vunpack.c.l.b16 %v1614
    %v1682 = vunpack.c.h.b16 %v1614
    %v1683 = vunpack.c.l.b16 %v1615
    %v1684 = vunpack.c.h.b16 %v1615
    %v1685 = vunpack.c.l.b16 %v1616
    %v1686 = vunpack.c.h.b16 %v1616
    %v1687 = vunpack.c.l.b16 %v1617
    %v1688 = vunpack.c.h.b16 %v1617
    %v1689 = vunpack.c.l.b16 %v1618
    %v1690 = vunpack.c.h.b16 %v1618
    %v1691 = vunpack.c.l.b16 %v1619
    %v1692 = vunpack.c.h.b16 %v1619
    %v1693 = vunpack.c.l.b16 %v1620
    %v1694 = vunpack.c.h.b16 %v1620
    %v1695 = vunpack.c.l.b16 %v1621
    %v1696 = vunpack.c.h.b16 %v1621
    %v1697 = vunpack.c.l.b16 %v1622
    %v1698 = vunpack.c.h.b16 %v1622
    %v1699 = vunpack.c.l.b16 %v1623
    %v1700 = vunpack.c.h.b16 %v1623
    %v1701 = vunpack.c.l.b16 %v1624
    %v1702 = vunpack.c.h.b16 %v1624
    %v1703 = vunpack.c.l.b16 %v1625
    %v1704 = vunpack.c.h.b16 %v1625
    %v1705 = vunpack.c.l.b16 %v1626
    %v1706 = vunpack.c.h.b16 %v1626
    %v1707 = vunpack.c.l.b16 %v1627
    %v1708 = vunpack.c.h.b16 %v1627
    %v1709 = vunpack.c.l.b16 %v1628
    %v1710 = vunpack.c.h.b16 %v1628
    %v1711 = vunpack.c.l.b16 %v1629
    %v1712 = vunpack.c.h.b16 %v1629
    %v1713 = vunpack.c.l.b16 %v1630
    %v1714 = vunpack.c.h.b16 %v1630
    %v1715 = vunpack.c.l.b16 %v1631
    %v1716 = vunpack.c.h.b16 %v1631
    %v1717 = vunpack.c.l.b16 %v1632
    %v1718 = vunpack.c.h.b16 %v1632
    %v1719 = vunpack.c.l.b16 %v1633
    %v1720 = vunpack.c.h.b16 %v1633
    %v1721 = vunpack.c.l.b16 %v1634
    %v1722 = vunpack.c.h.b16 %v1634
    %v1723 = vunpack.c.l.b16 %v1635
    %v1724 = vunpack.c.h.b16 %v1635
    %v1725 = vunpack.c.l.b16 %v1636
    %v1726 = vunpack.c.h.b16 %v1636
    %v1727 = vunpack.c.l.b16 %v1637
    %v1728 = vunpack.c.h.b16 %v1637
    %v1729 = vunpack.c.l.b16 %v1638
    %v1730 = vunpack.c.h.b16 %v1638
    %v1731 = vunpack.c.l.b16 %v1639
    %v1732 = vunpack.c.h.b16 %v1639
    %v1733 = vunpack.c.l.b16 %v1640
    %v1734 = vunpack.c.h.b16 %v1640
    %v1735 = vunpack.c.l.b16 %v1641
    %v1736 = vunpack.c.h.b16 %v1641
    %v1737 = vunpack.c.l.b16 %v1642
    %v1738 = vunpack.c.h.b16 %v1642
    %v1739 = vpack.c.b16 %v1679, %v1675
    %v1740 = vpack.c.b16 %v1680, %v1676
    %v1741 = vpack.c.b16 %v1681, %v1677
    %v1742 = vpack.c.b16 %v1682, %v1678
    %v1743 = vpack.c.b16 %v1687, %v1683
    %v1744 = vpack.c.b16 %v1688, %v1684
    %v1745 = vpack.c.b16 %v1689, %v1685
    %v1746 = vpack.c.b16 %v1690, %v1686
    %v1747 = vpack.c.b16 %v1695, %v1691
    %v1748 = vpack.c.b16 %v1696, %v1692
    %v1749 = vpack.c.b16 %v1697, %v1693
    %v1750 = vpack.c.b16 %v1698, %v1694
    %v1751 = vpack.c.b16 %v1703, %v1699
    %v1752 = vpack.c.b16 %v1704, %v1700
    %v1753 = vpack.c.b16 %v1705, %v1701
    %v1754 = vpack.c.b16 %v1706, %v1702
    %v1755 = vpack.c.b16 %v1711, %v1707
    %v1756 = vpack.c.b16 %v1712, %v1708
    %v1757 = vpack.c.b16 %v1713, %v1709
    %v1758 = vpack.c.b16 %v1714, %v1710
    %v1759 = vpack.c.b16 %v1719, %v1715
    %v1760 = vpack.c.b16 %v1720, %v1716
    %v1761 = vpack.c.b16 %v1721, %v1717
    %v1762 = vpack.c.b16 %v1722, %v1718
    %v1763 = vpack.c.b16 %v1727, %v1723
    %v1764 = vpack.c.b16 %v1728, %v1724
    %v1765 = vpack.c.b16 %v1729, %v1725
    %v1766 = vpack.c.b16 %v1730, %v1726
    %v1767 = vpack.c.b16 %v1735, %v1731
    %v1768 = vpack.c.b16 %v1736, %v1732
    %v1769 = vpack.c.b16 %v1737, %v1733
    %v1770 = vpack.c.b16 %v1738, %v1734
    %1803 = vmatprep.subr.bf16.mxu0 %v1740
    %1804 = vmatpush1.bf16.msra.mxu0 %v1739
    %1805 = vmatprep.subr.bf16.mxu0 %v1744
    %1806 = vmatpush1.bf16.msra.mxu0 %v1743
    %1807 = vmatprep.subr.bf16.mxu0 %v1748
    %1808 = vmatpush1.bf16.msra.mxu0 %v1747
    %1809 = vmatprep.subr.bf16.mxu0 %v1752
    %1810 = vmatpush1.bf16.msra.mxu0 %v1751
    %1811 = vmatprep.subr.bf16.mxu0 %v1756
    %1812 = vmatpush1.bf16.msra.mxu0 %v1755
    %1813 = vmatprep.subr.bf16.mxu0 %v1760
    %1814 = vmatpush1.bf16.msra.mxu0 %v1759
    %1815 = vmatprep.subr.bf16.mxu0 %v1764
    %1816 = vmatpush1.bf16.msra.mxu0 %v1763
    %1817 = vmatprep.subr.bf16.mxu0 %v1768
    %1818 = vmatpush1.bf16.msra.mxu0 %v1767
    %1819 = vmatprep.subr.bf16.mxu0 0
    %1820 = vmatpush1.bf16.msra.mxu0 0
    %1821 = vmatprep.subr.bf16.mxu0 0
    %1822 = vmatpush1.bf16.msra.mxu0 0
    %1823 = vmatprep.subr.bf16.mxu0 0
    %1824 = vmatpush1.bf16.msra.mxu0 0
    %1825 = vmatprep.subr.bf16.mxu0 0
    %1826 = vmatpush1.bf16.msra.mxu0 0
    %1827 = vmatprep.subr.bf16.mxu0 0
    %1828 = vmatpush1.bf16.msra.mxu0 0
    %1829 = vmatprep.subr.bf16.mxu0 0
    %1830 = vmatpush1.bf16.msra.mxu0 0
    %1831 = vmatprep.subr.bf16.mxu0 0
    %1832 = vmatpush1.bf16.msra.mxu0 0
    %1833 = vmatprep.subr.bf16.mxu0 0
    %1834 = vmatpush1.bf16.msra.mxu0 0
    %1835 = vmatprep.mubr.bf16.mxu0 0
    %1836 = vmatmul.mubr.bf16.gmra.mrb[0].mxu0 %v1610
    %v1837 = vpop.f32.mrb[0].mxu0
    %v1838 = vadd.f32 0.0, %v1837
    %v1839 = vpop.f32.mrb[0].mxu0
    %v1840 = vadd.f32 0.0, %v1839
    %v1841 = vpop.f32.mrb[0].mxu0
    %v1842 = vpop.f32.mrb[0].mxu0
    %1843 = vdwg.mxu0
    %1844 = vmatprep.subr.bf16.mxu0 %v1742
    %1845 = vmatpush1.bf16.msra.mxu0 %v1741
    %1846 = vmatprep.subr.bf16.mxu0 %v1746
    %1847 = vmatpush1.bf16.msra.mxu0 %v1745
    %1848 = vmatprep.subr.bf16.mxu0 %v1750
    %1849 = vmatpush1.bf16.msra.mxu0 %v1749
    %1850 = vmatprep.subr.bf16.mxu0 %v1754
    %1851 = vmatpush1.bf16.msra.mxu0 %v1753
    %1852 = vmatprep.subr.bf16.mxu0 %v1758
    %1853 = vmatpush1.bf16.msra.mxu0 %v1757
    %1854 = vmatprep.subr.bf16.mxu0 %v1762
    %1855 = vmatpush1.bf16.msra.mxu0 %v1761
    %1856 = vmatprep.subr.bf16.mxu0 %v1766
    %1857 = vmatpush1.bf16.msra.mxu0 %v1765
    %1858 = vmatprep.subr.bf16.mxu0 %v1770
    %1859 = vmatpush1.bf16.msra.mxu0 %v1769
    %1860 = vmatprep.subr.bf16.mxu0 0
    %1861 = vmatpush1.bf16.msra.mxu0 0
    %1862 = vmatprep.subr.bf16.mxu0 0
    %1863 = vmatpush1.bf16.msra.mxu0 0
    %1864 = vmatprep.subr.bf16.mxu0 0
    %1865 = vmatpush1.bf16.msra.mxu0 0
    %1866 = vmatprep.subr.bf16.mxu0 0
    %1867 = vmatpush1.bf16.msra.mxu0 0
    %1868 = vmatprep.subr.bf16.mxu0 0
    %1869 = vmatpush1.bf16.msra.mxu0 0
    %1870 = vmatprep.subr.bf16.mxu0 0
    %1871 = vmatpush1.bf16.msra.mxu0 0
    %1872 = vmatprep.subr.bf16.mxu0 0
    %1873 = vmatpush1.bf16.msra.mxu0 0
    %1874 = vmatprep.subr.bf16.mxu0 0
    %1875 = vmatpush1.bf16.msra.mxu0 0
    %1876 = vmatprep.mubr.bf16.mxu0 0
    %1877 = vmatmul.mubr.bf16.gmra.mrb[0].mxu0 %v1610
    %v1878 = vpop.f32.mrb[0].mxu0
    %v1879 = vadd.f32 0.0, %v1878
    %v1880 = vpop.f32.mrb[0].mxu0
    %v1881 = vadd.f32 0.0, %v1880
    %v1882 = vpop.f32.mrb[0].mxu0
    %v1883 = vpop.f32.mrb[0].mxu0
    %1884 = vdwg.mxu0
    %v1885 = vadd.f32 %v1606, %v1838
    %v1886 = vadd.f32 %v1607, %v1840
    %v1887 = vadd.f32 %v1608, %v1879
    %v1888 = vadd.f32 %v1609, %v1881
    %v1889 = vxor.u32 %v1885, 2147483648
    %v1890 = vxor.u32 %v1886, 2147483648
    %v1891 = vxor.u32 %v1887, 2147483648
    %v1892 = vmul.f32 %v1889, 1.442695
    %v1893 = vpow.pop %v1892
    %v1894 = vmul.f32 %v1890, 1.442695
    %v1895 = vpow.pop %v1894
    %v1896 = vmul.f32 %v1891, 1.442695
    %v1897 = vpow.pop %v1896
    %v1898 = vadd.f32 %v1893, 1.0
    %v1899 = vadd.f32 %v1895, 1.0
    %v1900 = vadd.f32 %v1897, 1.0
    %v1901 = vrcp.pop %v1898
    %v1902 = vmul.f32 1.0, %v1901
    %v1903 = vrcp.pop %v1899
    %v1904 = vmul.f32 1.0, %v1903
    %v1905 = vrcp.pop %v1900
    %v1906 = vmul.f32 1.0, %v1905
    %v1907 = vtanh.pop %v1888
    %v1908 = vmul.f32 %v1904, %v1598
    %v1909 = vmul.f32 %v1902, %v1907
    %v1910 = vadd.f32 %v1908, %v1909
    %v1911 = vtanh.pop %v1910
    %v1912 = vmul.f32 %v1906, %v1911
    %s1913 = scalar_lea.vmem [#allocation7], 40
    %1914 = vst [vmem:[%s1913] sm:$0xff] %v1912
    %s1915 = smul.u32 6, 4
    %s1916 = smul.addr %s1915, 8
    %s1917 = scalar_lea.vmem [#allocation2], %s1916
    %v1918 = vld [vmem:[%s1917] sm:$0xff]
    %v1919 = vld [vmem:[%s1917 + $0x8] sm:$0xff]
    %v1920 = vld [vmem:[%s1917 + $0x10] sm:$0xff]
    %v1921 = vld [vmem:[%s1917 + $0x18] sm:$0xff]
    %v1922 = vpack.c.bf16 %v1912, %v1912
    %v1923 = vld [vmem:[#allocation5] sm:$0xff]
    %v1924 = vld [vmem:[#allocation5 + $0x8] sm:$0xff]
    %v1925 = vld [vmem:[#allocation5 + $0x10] sm:$0xff]
    %v1926 = vld [vmem:[#allocation5 + $0x18] sm:$0xff]
    %v1927 = vld [vmem:[#allocation5 + $0x20] sm:$0xff]
    %v1928 = vld [vmem:[#allocation5 + $0x28] sm:$0xff]
    %v1929 = vld [vmem:[#allocation5 + $0x30] sm:$0xff]
    %v1930 = vld [vmem:[#allocation5 + $0x38] sm:$0xff]
    %v1931 = vld [vmem:[#allocation5 + $0x40] sm:$0xff]
    %v1932 = vld [vmem:[#allocation5 + $0x48] sm:$0xff]
    %v1933 = vld [vmem:[#allocation5 + $0x50] sm:$0xff]
    %v1934 = vld [vmem:[#allocation5 + $0x58] sm:$0xff]
    %v1935 = vld [vmem:[#allocation5 + $0x60] sm:$0xff]
    %v1936 = vld [vmem:[#allocation5 + $0x68] sm:$0xff]
    %v1937 = vld [vmem:[#allocation5 + $0x70] sm:$0xff]
    %v1938 = vld [vmem:[#allocation5 + $0x78] sm:$0xff]
    %v1939 = vld [vmem:[#allocation5 + $0x80] sm:$0xff]
    %v1940 = vld [vmem:[#allocation5 + $0x88] sm:$0xff]
    %v1941 = vld [vmem:[#allocation5 + $0x90] sm:$0xff]
    %v1942 = vld [vmem:[#allocation5 + $0x98] sm:$0xff]
    %v1943 = vld [vmem:[#allocation5 + $0xa0] sm:$0xff]
    %v1944 = vld [vmem:[#allocation5 + $0xa8] sm:$0xff]
    %v1945 = vld [vmem:[#allocation5 + $0xb0] sm:$0xff]
    %v1946 = vld [vmem:[#allocation5 + $0xb8] sm:$0xff]
    %v1947 = vld [vmem:[#allocation5 + $0xc0] sm:$0xff]
    %v1948 = vld [vmem:[#allocation5 + $0xc8] sm:$0xff]
    %v1949 = vld [vmem:[#allocation5 + $0xd0] sm:$0xff]
    %v1950 = vld [vmem:[#allocation5 + $0xd8] sm:$0xff]
    %v1951 = vld [vmem:[#allocation5 + $0xe0] sm:$0xff]
    %v1952 = vld [vmem:[#allocation5 + $0xe8] sm:$0xff]
    %v1953 = vld [vmem:[#allocation5 + $0xf0] sm:$0xff]
    %v1954 = vld [vmem:[#allocation5 + $0xf8] sm:$0xff]
    %v1987 = vunpack.c.l.b16 %v1923
    %v1988 = vunpack.c.h.b16 %v1923
    %v1989 = vunpack.c.l.b16 %v1924
    %v1990 = vunpack.c.h.b16 %v1924
    %v1991 = vunpack.c.l.b16 %v1925
    %v1992 = vunpack.c.h.b16 %v1925
    %v1993 = vunpack.c.l.b16 %v1926
    %v1994 = vunpack.c.h.b16 %v1926
    %v1995 = vunpack.c.l.b16 %v1927
    %v1996 = vunpack.c.h.b16 %v1927
    %v1997 = vunpack.c.l.b16 %v1928
    %v1998 = vunpack.c.h.b16 %v1928
    %v1999 = vunpack.c.l.b16 %v1929
    %v2000 = vunpack.c.h.b16 %v1929
    %v2001 = vunpack.c.l.b16 %v1930
    %v2002 = vunpack.c.h.b16 %v1930
    %v2003 = vunpack.c.l.b16 %v1931
    %v2004 = vunpack.c.h.b16 %v1931
    %v2005 = vunpack.c.l.b16 %v1932
    %v2006 = vunpack.c.h.b16 %v1932
    %v2007 = vunpack.c.l.b16 %v1933
    %v2008 = vunpack.c.h.b16 %v1933
    %v2009 = vunpack.c.l.b16 %v1934
    %v2010 = vunpack.c.h.b16 %v1934
    %v2011 = vunpack.c.l.b16 %v1935
    %v2012 = vunpack.c.h.b16 %v1935
    %v2013 = vunpack.c.l.b16 %v1936
    %v2014 = vunpack.c.h.b16 %v1936
    %v2015 = vunpack.c.l.b16 %v1937
    %v2016 = vunpack.c.h.b16 %v1937
    %v2017 = vunpack.c.l.b16 %v1938
    %v2018 = vunpack.c.h.b16 %v1938
    %v2019 = vunpack.c.l.b16 %v1939
    %v2020 = vunpack.c.h.b16 %v1939
    %v2021 = vunpack.c.l.b16 %v1940
    %v2022 = vunpack.c.h.b16 %v1940
    %v2023 = vunpack.c.l.b16 %v1941
    %v2024 = vunpack.c.h.b16 %v1941
    %v2025 = vunpack.c.l.b16 %v1942
    %v2026 = vunpack.c.h.b16 %v1942
    %v2027 = vunpack.c.l.b16 %v1943
    %v2028 = vunpack.c.h.b16 %v1943
    %v2029 = vunpack.c.l.b16 %v1944
    %v2030 = vunpack.c.h.b16 %v1944
    %v2031 = vunpack.c.l.b16 %v1945
    %v2032 = vunpack.c.h.b16 %v1945
    %v2033 = vunpack.c.l.b16 %v1946
    %v2034 = vunpack.c.h.b16 %v1946
    %v2035 = vunpack.c.l.b16 %v1947
    %v2036 = vunpack.c.h.b16 %v1947
    %v2037 = vunpack.c.l.b16 %v1948
    %v2038 = vunpack.c.h.b16 %v1948
    %v2039 = vunpack.c.l.b16 %v1949
    %v2040 = vunpack.c.h.b16 %v1949
    %v2041 = vunpack.c.l.b16 %v1950
    %v2042 = vunpack.c.h.b16 %v1950
    %v2043 = vunpack.c.l.b16 %v1951
    %v2044 = vunpack.c.h.b16 %v1951
    %v2045 = vunpack.c.l.b16 %v1952
    %v2046 = vunpack.c.h.b16 %v1952
    %v2047 = vunpack.c.l.b16 %v1953
    %v2048 = vunpack.c.h.b16 %v1953
    %v2049 = vunpack.c.l.b16 %v1954
    %v2050 = vunpack.c.h.b16 %v1954
    %v2051 = vpack.c.b16 %v1991, %v1987
    %v2052 = vpack.c.b16 %v1992, %v1988
    %v2053 = vpack.c.b16 %v1993, %v1989
    %v2054 = vpack.c.b16 %v1994, %v1990
    %v2055 = vpack.c.b16 %v1999, %v1995
    %v2056 = vpack.c.b16 %v2000, %v1996
    %v2057 = vpack.c.b16 %v2001, %v1997
    %v2058 = vpack.c.b16 %v2002, %v1998
    %v2059 = vpack.c.b16 %v2007, %v2003
    %v2060 = vpack.c.b16 %v2008, %v2004
    %v2061 = vpack.c.b16 %v2009, %v2005
    %v2062 = vpack.c.b16 %v2010, %v2006
    %v2063 = vpack.c.b16 %v2015, %v2011
    %v2064 = vpack.c.b16 %v2016, %v2012
    %v2065 = vpack.c.b16 %v2017, %v2013
    %v2066 = vpack.c.b16 %v2018, %v2014
    %v2067 = vpack.c.b16 %v2023, %v2019
    %v2068 = vpack.c.b16 %v2024, %v2020
    %v2069 = vpack.c.b16 %v2025, %v2021
    %v2070 = vpack.c.b16 %v2026, %v2022
    %v2071 = vpack.c.b16 %v2031, %v2027
    %v2072 = vpack.c.b16 %v2032, %v2028
    %v2073 = vpack.c.b16 %v2033, %v2029
    %v2074 = vpack.c.b16 %v2034, %v2030
    %v2075 = vpack.c.b16 %v2039, %v2035
    %v2076 = vpack.c.b16 %v2040, %v2036
    %v2077 = vpack.c.b16 %v2041, %v2037
    %v2078 = vpack.c.b16 %v2042, %v2038
    %v2079 = vpack.c.b16 %v2047, %v2043
    %v2080 = vpack.c.b16 %v2048, %v2044
    %v2081 = vpack.c.b16 %v2049, %v2045
    %v2082 = vpack.c.b16 %v2050, %v2046
    %2115 = vmatprep.subr.bf16.mxu0 %v2052
    %2116 = vmatpush1.bf16.msra.mxu0 %v2051
    %2117 = vmatprep.subr.bf16.mxu0 %v2056
    %2118 = vmatpush1.bf16.msra.mxu0 %v2055
    %2119 = vmatprep.subr.bf16.mxu0 %v2060
    %2120 = vmatpush1.bf16.msra.mxu0 %v2059
    %2121 = vmatprep.subr.bf16.mxu0 %v2064
    %2122 = vmatpush1.bf16.msra.mxu0 %v2063
    %2123 = vmatprep.subr.bf16.mxu0 %v2068
    %2124 = vmatpush1.bf16.msra.mxu0 %v2067
    %2125 = vmatprep.subr.bf16.mxu0 %v2072
    %2126 = vmatpush1.bf16.msra.mxu0 %v2071
    %2127 = vmatprep.subr.bf16.mxu0 %v2076
    %2128 = vmatpush1.bf16.msra.mxu0 %v2075
    %2129 = vmatprep.subr.bf16.mxu0 %v2080
    %2130 = vmatpush1.bf16.msra.mxu0 %v2079
    %2131 = vmatprep.subr.bf16.mxu0 0
    %2132 = vmatpush1.bf16.msra.mxu0 0
    %2133 = vmatprep.subr.bf16.mxu0 0
    %2134 = vmatpush1.bf16.msra.mxu0 0
    %2135 = vmatprep.subr.bf16.mxu0 0
    %2136 = vmatpush1.bf16.msra.mxu0 0
    %2137 = vmatprep.subr.bf16.mxu0 0
    %2138 = vmatpush1.bf16.msra.mxu0 0
    %2139 = vmatprep.subr.bf16.mxu0 0
    %2140 = vmatpush1.bf16.msra.mxu0 0
    %2141 = vmatprep.subr.bf16.mxu0 0
    %2142 = vmatpush1.bf16.msra.mxu0 0
    %2143 = vmatprep.subr.bf16.mxu0 0
    %2144 = vmatpush1.bf16.msra.mxu0 0
    %2145 = vmatprep.subr.bf16.mxu0 0
    %2146 = vmatpush1.bf16.msra.mxu0 0
    %2147 = vmatprep.mubr.bf16.mxu0 0
    %2148 = vmatmul.mubr.bf16.gmra.mrb[0].mxu0 %v1922
    %v2149 = vpop.f32.mrb[0].mxu0
    %v2150 = vadd.f32 0.0, %v2149
    %v2151 = vpop.f32.mrb[0].mxu0
    %v2152 = vadd.f32 0.0, %v2151
    %v2153 = vpop.f32.mrb[0].mxu0
    %v2154 = vpop.f32.mrb[0].mxu0
    %2155 = vdwg.mxu0
    %2156 = vmatprep.subr.bf16.mxu0 %v2054
    %2157 = vmatpush1.bf16.msra.mxu0 %v2053
    %2158 = vmatprep.subr.bf16.mxu0 %v2058
    %2159 = vmatpush1.bf16.msra.mxu0 %v2057
    %2160 = vmatprep.subr.bf16.mxu0 %v2062
    %2161 = vmatpush1.bf16.msra.mxu0 %v2061
    %2162 = vmatprep.subr.bf16.mxu0 %v2066
    %2163 = vmatpush1.bf16.msra.mxu0 %v2065
    %2164 = vmatprep.subr.bf16.mxu0 %v2070
    %2165 = vmatpush1.bf16.msra.mxu0 %v2069
    %2166 = vmatprep.subr.bf16.mxu0 %v2074
    %2167 = vmatpush1.bf16.msra.mxu0 %v2073
    %2168 = vmatprep.subr.bf16.mxu0 %v2078
    %2169 = vmatpush1.bf16.msra.mxu0 %v2077
    %2170 = vmatprep.subr.bf16.mxu0 %v2082
    %2171 = vmatpush1.bf16.msra.mxu0 %v2081
    %2172 = vmatprep.subr.bf16.mxu0 0
    %2173 = vmatpush1.bf16.msra.mxu0 0
    %2174 = vmatprep.subr.bf16.mxu0 0
    %2175 = vmatpush1.bf16.msra.mxu0 0
    %2176 = vmatprep.subr.bf16.mxu0 0
    %2177 = vmatpush1.bf16.msra.mxu0 0
    %2178 = vmatprep.subr.bf16.mxu0 0
    %2179 = vmatpush1.bf16.msra.mxu0 0
    %2180 = vmatprep.subr.bf16.mxu0 0
    %2181 = vmatpush1.bf16.msra.mxu0 0
    %2182 = vmatprep.subr.bf16.mxu0 0
    %2183 = vmatpush1.bf16.msra.mxu0 0
    %2184 = vmatprep.subr.bf16.mxu0 0
    %2185 = vmatpush1.bf16.msra.mxu0 0
    %2186 = vmatprep.subr.bf16.mxu0 0
    %2187 = vmatpush1.bf16.msra.mxu0 0
    %2188 = vmatprep.mubr.bf16.mxu0 0
    %2189 = vmatmul.mubr.bf16.gmra.mrb[0].mxu0 %v1922
    %v2190 = vpop.f32.mrb[0].mxu0
    %v2191 = vadd.f32 0.0, %v2190
    %v2192 = vpop.f32.mrb[0].mxu0
    %v2193 = vadd.f32 0.0, %v2192
    %v2194 = vpop.f32.mrb[0].mxu0
    %v2195 = vpop.f32.mrb[0].mxu0
    %2196 = vdwg.mxu0
    %v2197 = vadd.f32 %v1918, %v2150
    %v2198 = vadd.f32 %v1919, %v2152
    %v2199 = vadd.f32 %v1920, %v2191
    %v2200 = vadd.f32 %v1921, %v2193
    %v2201 = vxor.u32 %v2197, 2147483648
    %v2202 = vxor.u32 %v2198, 2147483648
    %v2203 = vxor.u32 %v2199, 2147483648
    %v2204 = vmul.f32 %v2201, 1.442695
    %v2205 = vpow.pop %v2204
    %v2206 = vmul.f32 %v2202, 1.442695
    %v2207 = vpow.pop %v2206
    %v2208 = vmul.f32 %v2203, 1.442695
    %v2209 = vpow.pop %v2208
    %v2210 = vadd.f32 %v2205, 1.0
    %v2211 = vadd.f32 %v2207, 1.0
    %v2212 = vadd.f32 %v2209, 1.0
    %v2213 = vrcp.pop %v2210
    %v2214 = vmul.f32 1.0, %v2213
    %v2215 = vrcp.pop %v2211
    %v2216 = vmul.f32 1.0, %v2215
    %v2217 = vrcp.pop %v2212
    %v2218 = vmul.f32 1.0, %v2217
    %v2219 = vtanh.pop %v2200
    %v2220 = vmul.f32 %v2216, %v1910
    %v2221 = vmul.f32 %v2214, %v2219
    %v2222 = vadd.f32 %v2220, %v2221
    %v2223 = vtanh.pop %v2222
    %v2224 = vmul.f32 %v2218, %v2223
    %s2225 = scalar_lea.vmem [#allocation7], 48
    %2226 = vst [vmem:[%s2225] sm:$0xff] %v2224
    %s2227 = smul.u32 7, 4
    %s2228 = smul.addr %s2227, 8
    %s2229 = scalar_lea.vmem [#allocation2], %s2228
    %v2230 = vld [vmem:[%s2229] sm:$0xff]
    %v2231 = vld [vmem:[%s2229 + $0x8] sm:$0xff]
    %v2232 = vld [vmem:[%s2229 + $0x10] sm:$0xff]
    %v2233 = vld [vmem:[%s2229 + $0x18] sm:$0xff]
    %v2234 = vpack.c.bf16 %v2224, %v2224
    %v2235 = vld [vmem:[#allocation5] sm:$0xff]
    %v2236 = vld [vmem:[#allocation5 + $0x8] sm:$0xff]
    %v2237 = vld [vmem:[#allocation5 + $0x10] sm:$0xff]
    %v2238 = vld [vmem:[#allocation5 + $0x18] sm:$0xff]
    %v2239 = vld [vmem:[#allocation5 + $0x20] sm:$0xff]
    %v2240 = vld [vmem:[#allocation5 + $0x28] sm:$0xff]
    %v2241 = vld [vmem:[#allocation5 + $0x30] sm:$0xff]
    %v2242 = vld [vmem:[#allocation5 + $0x38] sm:$0xff]
    %v2243 = vld [vmem:[#allocation5 + $0x40] sm:$0xff]
    %v2244 = vld [vmem:[#allocation5 + $0x48] sm:$0xff]
    %v2245 = vld [vmem:[#allocation5 + $0x50] sm:$0xff]
    %v2246 = vld [vmem:[#allocation5 + $0x58] sm:$0xff]
    %v2247 = vld [vmem:[#allocation5 + $0x60] sm:$0xff]
    %v2248 = vld [vmem:[#allocation5 + $0x68] sm:$0xff]
    %v2249 = vld [vmem:[#allocation5 + $0x70] sm:$0xff]
    %v2250 = vld [vmem:[#allocation5 + $0x78] sm:$0xff]
    %v2251 = vld [vmem:[#allocation5 + $0x80] sm:$0xff]
    %v2252 = vld [vmem:[#allocation5 + $0x88] sm:$0xff]
    %v2253 = vld [vmem:[#allocation5 + $0x90] sm:$0xff]
    %v2254 = vld [vmem:[#allocation5 + $0x98] sm:$0xff]
    %v2255 = vld [vmem:[#allocation5 + $0xa0] sm:$0xff]
    %v2256 = vld [vmem:[#allocation5 + $0xa8] sm:$0xff]
    %v2257 = vld [vmem:[#allocation5 + $0xb0] sm:$0xff]
    %v2258 = vld [vmem:[#allocation5 + $0xb8] sm:$0xff]
    %v2259 = vld [vmem:[#allocation5 + $0xc0] sm:$0xff]
    %v2260 = vld [vmem:[#allocation5 + $0xc8] sm:$0xff]
    %v2261 = vld [vmem:[#allocation5 + $0xd0] sm:$0xff]
    %v2262 = vld [vmem:[#allocation5 + $0xd8] sm:$0xff]
    %v2263 = vld [vmem:[#allocation5 + $0xe0] sm:$0xff]
    %v2264 = vld [vmem:[#allocation5 + $0xe8] sm:$0xff]
    %v2265 = vld [vmem:[#allocation5 + $0xf0] sm:$0xff]
    %v2266 = vld [vmem:[#allocation5 + $0xf8] sm:$0xff]
    %v2299 = vunpack.c.l.b16 %v2235
    %v2300 = vunpack.c.h.b16 %v2235
    %v2301 = vunpack.c.l.b16 %v2236
    %v2302 = vunpack.c.h.b16 %v2236
    %v2303 = vunpack.c.l.b16 %v2237
    %v2304 = vunpack.c.h.b16 %v2237
    %v2305 = vunpack.c.l.b16 %v2238
    %v2306 = vunpack.c.h.b16 %v2238
    %v2307 = vunpack.c.l.b16 %v2239
    %v2308 = vunpack.c.h.b16 %v2239
    %v2309 = vunpack.c.l.b16 %v2240
    %v2310 = vunpack.c.h.b16 %v2240
    %v2311 = vunpack.c.l.b16 %v2241
    %v2312 = vunpack.c.h.b16 %v2241
    %v2313 = vunpack.c.l.b16 %v2242
    %v2314 = vunpack.c.h.b16 %v2242
    %v2315 = vunpack.c.l.b16 %v2243
    %v2316 = vunpack.c.h.b16 %v2243
    %v2317 = vunpack.c.l.b16 %v2244
    %v2318 = vunpack.c.h.b16 %v2244
    %v2319 = vunpack.c.l.b16 %v2245
    %v2320 = vunpack.c.h.b16 %v2245
    %v2321 = vunpack.c.l.b16 %v2246
    %v2322 = vunpack.c.h.b16 %v2246
    %v2323 = vunpack.c.l.b16 %v2247
    %v2324 = vunpack.c.h.b16 %v2247
    %v2325 = vunpack.c.l.b16 %v2248
    %v2326 = vunpack.c.h.b16 %v2248
    %v2327 = vunpack.c.l.b16 %v2249
    %v2328 = vunpack.c.h.b16 %v2249
    %v2329 = vunpack.c.l.b16 %v2250
    %v2330 = vunpack.c.h.b16 %v2250
    %v2331 = vunpack.c.l.b16 %v2251
    %v2332 = vunpack.c.h.b16 %v2251
    %v2333 = vunpack.c.l.b16 %v2252
    %v2334 = vunpack.c.h.b16 %v2252
    %v2335 = vunpack.c.l.b16 %v2253
    %v2336 = vunpack.c.h.b16 %v2253
    %v2337 = vunpack.c.l.b16 %v2254
    %v2338 = vunpack.c.h.b16 %v2254
    %v2339 = vunpack.c.l.b16 %v2255
    %v2340 = vunpack.c.h.b16 %v2255
    %v2341 = vunpack.c.l.b16 %v2256
    %v2342 = vunpack.c.h.b16 %v2256
    %v2343 = vunpack.c.l.b16 %v2257
    %v2344 = vunpack.c.h.b16 %v2257
    %v2345 = vunpack.c.l.b16 %v2258
    %v2346 = vunpack.c.h.b16 %v2258
    %v2347 = vunpack.c.l.b16 %v2259
    %v2348 = vunpack.c.h.b16 %v2259
    %v2349 = vunpack.c.l.b16 %v2260
    %v2350 = vunpack.c.h.b16 %v2260
    %v2351 = vunpack.c.l.b16 %v2261
    %v2352 = vunpack.c.h.b16 %v2261
    %v2353 = vunpack.c.l.b16 %v2262
    %v2354 = vunpack.c.h.b16 %v2262
    %v2355 = vunpack.c.l.b16 %v2263
    %v2356 = vunpack.c.h.b16 %v2263
    %v2357 = vunpack.c.l.b16 %v2264
    %v2358 = vunpack.c.h.b16 %v2264
    %v2359 = vunpack.c.l.b16 %v2265
    %v2360 = vunpack.c.h.b16 %v2265
    %v2361 = vunpack.c.l.b16 %v2266
    %v2362 = vunpack.c.h.b16 %v2266
    %v2363 = vpack.c.b16 %v2303, %v2299
    %v2364 = vpack.c.b16 %v2304, %v2300
    %v2365 = vpack.c.b16 %v2305, %v2301
    %v2366 = vpack.c.b16 %v2306, %v2302
    %v2367 = vpack.c.b16 %v2311, %v2307
    %v2368 = vpack.c.b16 %v2312, %v2308
    %v2369 = vpack.c.b16 %v2313, %v2309
    %v2370 = vpack.c.b16 %v2314, %v2310
    %v2371 = vpack.c.b16 %v2319, %v2315
    %v2372 = vpack.c.b16 %v2320, %v2316
    %v2373 = vpack.c.b16 %v2321, %v2317
    %v2374 = vpack.c.b16 %v2322, %v2318
    %v2375 = vpack.c.b16 %v2327, %v2323
    %v2376 = vpack.c.b16 %v2328, %v2324
    %v2377 = vpack.c.b16 %v2329, %v2325
    %v2378 = vpack.c.b16 %v2330, %v2326
    %v2379 = vpack.c.b16 %v2335, %v2331
    %v2380 = vpack.c.b16 %v2336, %v2332
    %v2381 = vpack.c.b16 %v2337, %v2333
    %v2382 = vpack.c.b16 %v2338, %v2334
    %v2383 = vpack.c.b16 %v2343, %v2339
    %v2384 = vpack.c.b16 %v2344, %v2340
    %v2385 = vpack.c.b16 %v2345, %v2341
    %v2386 = vpack.c.b16 %v2346, %v2342
    %v2387 = vpack.c.b16 %v2351, %v2347
    %v2388 = vpack.c.b16 %v2352, %v2348
    %v2389 = vpack.c.b16 %v2353, %v2349
    %v2390 = vpack.c.b16 %v2354, %v2350
    %v2391 = vpack.c.b16 %v2359, %v2355
    %v2392 = vpack.c.b16 %v2360, %v2356
    %v2393 = vpack.c.b16 %v2361, %v2357
    %v2394 = vpack.c.b16 %v2362, %v2358
    %2427 = vmatprep.subr.bf16.mxu0 %v2364
    %2428 = vmatpush1.bf16.msra.mxu0 %v2363
    %2429 = vmatprep.subr.bf16.mxu0 %v2368
    %2430 = vmatpush1.bf16.msra.mxu0 %v2367
    %2431 = vmatprep.subr.bf16.mxu0 %v2372
    %2432 = vmatpush1.bf16.msra.mxu0 %v2371
    %2433 = vmatprep.subr.bf16.mxu0 %v2376
    %2434 = vmatpush1.bf16.msra.mxu0 %v2375
    %2435 = vmatprep.subr.bf16.mxu0 %v2380
    %2436 = vmatpush1.bf16.msra.mxu0 %v2379
    %2437 = vmatprep.subr.bf16.mxu0 %v2384
    %2438 = vmatpush1.bf16.msra.mxu0 %v2383
    %2439 = vmatprep.subr.bf16.mxu0 %v2388
    %2440 = vmatpush1.bf16.msra.mxu0 %v2387
    %2441 = vmatprep.subr.bf16.mxu0 %v2392
    %2442 = vmatpush1.bf16.msra.mxu0 %v2391
    %2443 = vmatprep.subr.bf16.mxu0 0
    %2444 = vmatpush1.bf16.msra.mxu0 0
    %2445 = vmatprep.subr.bf16.mxu0 0
    %2446 = vmatpush1.bf16.msra.mxu0 0
    %2447 = vmatprep.subr.bf16.mxu0 0
    %2448 = vmatpush1.bf16.msra.mxu0 0
    %2449 = vmatprep.subr.bf16.mxu0 0
    %2450 = vmatpush1.bf16.msra.mxu0 0
    %2451 = vmatprep.subr.bf16.mxu0 0
    %2452 = vmatpush1.bf16.msra.mxu0 0
    %2453 = vmatprep.subr.bf16.mxu0 0
    %2454 = vmatpush1.bf16.msra.mxu0 0
    %2455 = vmatprep.subr.bf16.mxu0 0
    %2456 = vmatpush1.bf16.msra.mxu0 0
    %2457 = vmatprep.subr.bf16.mxu0 0
    %2458 = vmatpush1.bf16.msra.mxu0 0
    %2459 = vmatprep.mubr.bf16.mxu0 0
    %2460 = vmatmul.mubr.bf16.gmra.mrb[0].mxu0 %v2234
    %v2461 = vpop.f32.mrb[0].mxu0
    %v2462 = vadd.f32 0.0, %v2461
    %v2463 = vpop.f32.mrb[0].mxu0
    %v2464 = vadd.f32 0.0, %v2463
    %v2465 = vpop.f32.mrb[0].mxu0
    %v2466 = vpop.f32.mrb[0].mxu0
    %2467 = vdwg.mxu0
    %2468 = vmatprep.subr.bf16.mxu0 %v2366
    %2469 = vmatpush1.bf16.msra.mxu0 %v2365
    %2470 = vmatprep.subr.bf16.mxu0 %v2370
    %2471 = vmatpush1.bf16.msra.mxu0 %v2369
    %2472 = vmatprep.subr.bf16.mxu0 %v2374
    %2473 = vmatpush1.bf16.msra.mxu0 %v2373
    %2474 = vmatprep.subr.bf16.mxu0 %v2378
    %2475 = vmatpush1.bf16.msra.mxu0 %v2377
    %2476 = vmatprep.subr.bf16.mxu0 %v2382
    %2477 = vmatpush1.bf16.msra.mxu0 %v2381
    %2478 = vmatprep.subr.bf16.mxu0 %v2386
    %2479 = vmatpush1.bf16.msra.mxu0 %v2385
    %2480 = vmatprep.subr.bf16.mxu0 %v2390
    %2481 = vmatpush1.bf16.msra.mxu0 %v2389
    %2482 = vmatprep.subr.bf16.mxu0 %v2394
    %2483 = vmatpush1.bf16.msra.mxu0 %v2393
    %2484 = vmatprep.subr.bf16.mxu0 0
    %2485 = vmatpush1.bf16.msra.mxu0 0
    %2486 = vmatprep.subr.bf16.mxu0 0
    %2487 = vmatpush1.bf16.msra.mxu0 0
    %2488 = vmatprep.subr.bf16.mxu0 0
    %2489 = vmatpush1.bf16.msra.mxu0 0
    %2490 = vmatprep.subr.bf16.mxu0 0
    %2491 = vmatpush1.bf16.msra.mxu0 0
    %2492 = vmatprep.subr.bf16.mxu0 0
    %2493 = vmatpush1.bf16.msra.mxu0 0
    %2494 = vmatprep.subr.bf16.mxu0 0
    %2495 = vmatpush1.bf16.msra.mxu0 0
    %2496 = vmatprep.subr.bf16.mxu0 0
    %2497 = vmatpush1.bf16.msra.mxu0 0
    %2498 = vmatprep.subr.bf16.mxu0 0
    %2499 = vmatpush1.bf16.msra.mxu0 0
    %2500 = vmatprep.mubr.bf16.mxu0 0
    %2501 = vmatmul.mubr.bf16.gmra.mrb[0].mxu0 %v2234
    %v2502 = vpop.f32.mrb[0].mxu0
    %v2503 = vadd.f32 0.0, %v2502
    %v2504 = vpop.f32.mrb[0].mxu0
    %v2505 = vadd.f32 0.0, %v2504
    %v2506 = vpop.f32.mrb[0].mxu0
    %v2507 = vpop.f32.mrb[0].mxu0
    %2508 = vdwg.mxu0
    %v2509 = vadd.f32 %v2230, %v2462
    %v2510 = vadd.f32 %v2231, %v2464
    %v2511 = vadd.f32 %v2232, %v2503
    %v2512 = vadd.f32 %v2233, %v2505
    %v2513 = vxor.u32 %v2509, 2147483648
    %v2514 = vxor.u32 %v2510, 2147483648
    %v2515 = vxor.u32 %v2511, 2147483648
    %v2516 = vmul.f32 %v2513, 1.442695
    %v2517 = vpow.pop %v2516
    %v2518 = vmul.f32 %v2514, 1.442695
    %v2519 = vpow.pop %v2518
    %v2520 = vmul.f32 %v2515, 1.442695
    %v2521 = vpow.pop %v2520
    %v2522 = vadd.f32 %v2517, 1.0
    %v2523 = vadd.f32 %v2519, 1.0
    %v2524 = vadd.f32 %v2521, 1.0
    %v2525 = vrcp.pop %v2522
    %v2526 = vmul.f32 1.0, %v2525
    %v2527 = vrcp.pop %v2523
    %v2528 = vmul.f32 1.0, %v2527
    %v2529 = vrcp.pop %v2524
    %v2530 = vmul.f32 1.0, %v2529
    %v2531 = vtanh.pop %v2512
    %v2532 = vmul.f32 %v2528, %v2222
    %v2533 = vmul.f32 %v2526, %v2531
    %v2534 = vadd.f32 %v2532, %v2533
    %v2535 = vtanh.pop %v2534
    %v2536 = vmul.f32 %v2530, %v2535
    %s2537 = scalar_lea.vmem [#allocation7], 56
    %2538 = vst [vmem:[%s2537] sm:$0xff] %v2536
    %2539 = vst [vmem:[#allocation8] sm:$0xff] %v2536
    %2540 = vst [vmem:[#allocation10] sm:$0xff] %v2534
    // Predicated region
    $region18: #{tpu_custom_call.1} parent=1 // pred_check
      _
    $region19: #{tpu_custom_call.1} parent=1 // pred_check_branch
      %2542 = sbr.rel (0) target = $region21
    $region20: #{tpu_custom_call.1} parent=1 // pred_region
      %s2544 = ssub.s32 1024, 1024
      %2545 = vsyncadd [#allocation4], %s2544
      %s2546 = sshll.u32 [#allocation7], 4
      %s2547 = int_to_ptr.vmem [resolvable:$true] %s2546
      %2552 = dma.vmem_to_hbm [thread:$0]  %s2547, 1024, %s2, [#allocation4], 128, 128, 8
    $region21: #{tpu_custom_call.1} parent=1 // pred_fallthru
      _
    // Predicated region
    $region22: #{tpu_custom_call.1} parent=1 // pred_check
      _
    $region23: #{tpu_custom_call.1} parent=1 // pred_check_branch
      %2554 = sbr.rel (0) target = $region25
    $region24: #{tpu_custom_call.1} parent=1 // pred_region
      %s2556 = ssub.s32 128, 128
      %2557 = vsyncadd [#allocation9], %s2556
      %s2559 = sshll.u32 [#allocation8], 4
      %s2560 = int_to_ptr.vmem [resolvable:$true] %s2559
      %2562 = dma.vmem_to_hbm [thread:$0]  %s2560, 128, %s3, [#allocation9]
    $region25: #{tpu_custom_call.1} parent=1 // pred_fallthru
      _
    // Predicated region
    $region26: #{tpu_custom_call.1} parent=1 // pred_check
      _
    $region27: #{tpu_custom_call.1} parent=1 // pred_check_branch
      %2564 = sbr.rel (0) target = $region29
    $region28: #{tpu_custom_call.1} parent=1 // pred_region
      %s2566 = ssub.s32 128, 128
      %2567 = vsyncadd [#allocation9], %s2566
      %s2569 = sshll.u32 [#allocation10], 4
      %s2570 = int_to_ptr.vmem [resolvable:$true] %s2569
      %2572 = dma.vmem_to_hbm [thread:$0]  %s2570, 128, %s4, [#allocation9]
    $region29: #{tpu_custom_call.1} parent=1 // pred_fallthru
      _
    // Predicated region
    $region30: #{tpu_custom_call.1} parent=1 // pred_check
      _
    $region31: #{tpu_custom_call.1} parent=1 // pred_check_branch
      %2574 = sbr.rel (0) target = $region33
    $region32: #{tpu_custom_call.1} parent=1 // pred_region
      %2575 = dma.done [#allocation4], 1024
    $region33: #{tpu_custom_call.1} parent=1 // pred_fallthru
      _
    // Predicated region
    $region34: #{tpu_custom_call.1} parent=1 // pred_check
      _
    $region35: #{tpu_custom_call.1} parent=1 // pred_check_branch
      %2577 = sbr.rel (0) target = $region37
    $region36: #{tpu_custom_call.1} parent=1 // pred_region
      %2578 = dma.done [#allocation9], 128
    $region37: #{tpu_custom_call.1} parent=1 // pred_fallthru
      _
    // Predicated region
    $region38: #{tpu_custom_call.1} parent=1 // pred_check
      _
    $region39: #{tpu_custom_call.1} parent=1 // pred_check_branch
      %2580 = sbr.rel (0) target = $region41
    $region40: #{tpu_custom_call.1} parent=1 // pred_region
      %2581 = dma.done [#allocation9], 128
    $region41: #{tpu_custom_call.1} parent=1 // pred_fallthru
      _
    %2582 = vsyncpa [#allocation3], 1
    %2583 = vsyncpa [#allocation6], 1
    %2584 = vsyncpa [#allocation4], 1
    %2585 = vsyncpa [#allocation9], 1

</llo_original>
